<compile_context>
chip_gen: v7x
topology: tpu7x:2x2x1
jax: 0.10.0
libtpu: 0.0.40
codegen_flags: <defaults>
</compile_context>

<pallas_src>
import math

import jax
import jax.numpy as jnp
from jax import lax
from jax.experimental import pallas as pl
from jax.experimental.pallas import tpu as pltpu

LN_EPS = 1e-5
MATMUL_DTYPE = jnp.bfloat16   # MXU operand dtype; accumulation stays f32


def _gelu_tanh(v):
    # tanh-approximate GELU: runs on the EUP slot instead of a VALU erf poly.
    c = 0.7978845608028654  # sqrt(2/pi)
    return 0.5 * v * (1.0 + jnp.tanh(c * (v + 0.044715 * v * v * v)))


def tsmixer_kernel(x_ref, mavg_ref,
                   w1_ref, b1_ref, w2_ref, b2_ref,
                   w3_ref, b3_ref, w4_ref, b4_ref,
                   g1_ref, be1_ref, g2_ref, be2_ref,
                   o_ref):
    f32 = jnp.float32
    dt = MATMUL_DTYPE

    x = x_ref[...].astype(f32)            # (tb, S*D), lane-dense
    mavg = mavg_ref[...]                  # (S*D, S*D) f32 block-diag 1/D averager

    def layernorm(v, g, b):
        # Group means over each D-sized lane segment via one matmul per moment.
        mu = jnp.dot(v, mavg, preferred_element_type=f32)
        ms = jnp.dot(v * v, mavg, preferred_element_type=f32)
        scale = g * lax.rsqrt(ms - mu * mu + LN_EPS)     # gamma * rsqrt(var+eps)
        return v * scale + (b - mu * scale)

    # ---- temporal mixing (seq-axis Linear folded into block-diag weights) ----
    y = layernorm(x, g1_ref[...], be1_ref[...])                      # (tb, S*D)
    h = jnp.dot(y.astype(dt), w1_ref[...],
                preferred_element_type=f32) + b1_ref[...]            # (tb, D*H)
    h = _gelu_tanh(h)
    t = jnp.dot(h.astype(dt), w2_ref[...],
                preferred_element_type=f32) + b2_ref[...]            # (tb, S*D)
    x1 = x + t                                                       # residual 1

    # ---- feature mixing ----
    z = layernorm(x1, g2_ref[...], be2_ref[...])                     # (tb, S*D)
    h2 = jnp.dot(z.astype(dt), w3_ref[...],
                 preferred_element_type=f32) + b3_ref[...]           # (tb, S*H)
    h2 = _gelu_tanh(h2)
    f = jnp.dot(h2.astype(dt), w4_ref[...],
                preferred_element_type=f32) + b4_ref[...]            # (tb, S*D)

    o_ref[...] = (x1 + f).astype(o_ref.dtype)                        # residual 2


def init_params(key, input_dim, hidden_dim):
    """Raw (unpacked) synthetic weights, pre-transposed for x @ W, all f32."""
    D, H = input_dim, hidden_dim
    ks = jax.random.split(key, 8)
    s = 0.05
    f32 = jnp.float32
    return {
        "w1": jax.random.normal(ks[0], (D, H), f32) * s,   # temporal_fc1 (in=S==D, out=H)
        "b1": jax.random.normal(ks[1], (H,), f32) * s,
        "w2": jax.random.normal(ks[2], (H, D), f32) * s,   # temporal_fc2 (in=H, out=S==D)
        "b2": jax.random.normal(ks[3], (D,), f32) * s,
        "w3": jax.random.normal(ks[4], (D, H), f32) * s,   # feature_fc1
        "b3": jax.random.normal(ks[5], (H,), f32) * s,
        "w4": jax.random.normal(ks[6], (H, D), f32) * s,   # feature_fc2
        "b4": jax.random.normal(ks[7], (D,), f32) * s,
        "g1": jnp.ones((D,), f32), "be1": jnp.zeros((D,), f32),
        "g2": jnp.ones((D,), f32), "be2": jnp.zeros((D,), f32),
    }


def pack_params(p, seq_len):
    """Fold the per-(S,D) transposes + Linears into block-diagonal lane-dense
    weights over the flattened (S*D) axis (row-major (s, d) flattening)."""
    S = seq_len
    D = p["g1"].shape[0]
    H = p["b1"].shape[0]
    f32 = jnp.float32
    eye_d = jnp.eye(D, dtype=f32)
    eye_s = jnp.eye(S, dtype=f32)

    # temporal_fc1: W1big[(s,d'),(d,h)] = w1[s,h] * delta(d',d)
    w1big = (p["w1"][:, None, None, :] * eye_d[None, :, :, None]).reshape(S * D, D * H)
    # temporal_fc2 (+ transpose back): W2big[(d',h),(s,d)] = w2[h,s] * delta(d',d)
    w2big = (p["w2"][None, :, :, None] * eye_d[:, None, None, :]).reshape(D * H, S * D)
    # feature_fc1: W3big[(s',d),(s,h)] = w3[d,h] * delta(s',s)
    w3big = (p["w3"][None, :, None, :] * eye_s[:, None, :, None]).reshape(S * D, S * H)
    # feature_fc2: W4big[(s',h),(s,d)] = w4[h,d] * delta(s',s)
    w4big = (p["w4"][None, :, None, :] * eye_s[:, None, :, None]).reshape(S * H, S * D)
    # LayerNorm group-average matrix: M[(s',d'),(s,d)] = delta(s',s) / D
    mavg = jnp.kron(eye_s, jnp.ones((D, D), f32) / D)

    return {
        "mavg": mavg,
        "w1": w1big.astype(MATMUL_DTYPE),
        "b1": jnp.tile(p["b1"], D).reshape(1, D * H),      # [(d,h)] -> b1[h]
        "w2": w2big.astype(MATMUL_DTYPE),
        "b2": jnp.repeat(p["b2"], D).reshape(1, S * D),    # [(s,d)] -> b2[s]
        "w3": w3big.astype(MATMUL_DTYPE),
        "b3": jnp.tile(p["b3"], S).reshape(1, S * H),      # [(s,h)] -> b3[h]
        "w4": w4big.astype(MATMUL_DTYPE),
        "b4": jnp.tile(p["b4"], S).reshape(1, S * D),      # [(s,d)] -> b4[d]
        "g1": jnp.tile(p["g1"], S).reshape(1, S * D),
        "be1": jnp.tile(p["be1"], S).reshape(1, S * D),
        "g2": jnp.tile(p["g2"], S).reshape(1, S * D),
        "be2": jnp.tile(p["be2"], S).reshape(1, S * D),
    }


def tsmixer_layer(x, packed, *, block_batch=8):
    """x: (B, S, D) with S == D.  packed: output of pack_params()."""
    B, S, D = x.shape
    if S != D:
        raise ValueError("TSMixerLayer forward requires seq_len == input_dim")
    SD = S * D
    DH = packed["w1"].shape[1]
    SH = packed["w3"].shape[1]

    # --- tile-size / grid selection (feedback #2/#3): aim for a grid that is
    # even and >= 4 (>= 2 pipelined steps per v7x TensorCore), keep the block
    # second-minor dim sublane-aligned, and pad B instead of shrinking tb.
    tb = min(block_batch, max(1, pl.cdiv(B, 4)))
    tb = max(8, ((tb + 7) // 8) * 8)
    grid = pl.cdiv(B, tb)
    if grid > 1 and grid % 2:
        grid += 1
    b_pad = grid * tb

    xr = x.reshape(B, SD)                     # lane-dense (B, S*D) slab
    if b_pad != B:
        xr = jnp.pad(xr, ((0, b_pad - B), (0, 0)))

    weight_args = [packed[k] for k in
                   ("mavg", "w1", "b1", "w2", "b2", "w3", "b3", "w4", "b4",
                    "g1", "be1", "g2", "be2")]

    def full_spec(arr):
        n = arr.ndim
        return pl.BlockSpec(arr.shape, lambda b, _n=n: (0,) * _n)

    in_specs = ([pl.BlockSpec((tb, SD), lambda b: (b, 0))]
                + [full_spec(a) for a in weight_args])
    out_spec = pl.BlockSpec((tb, SD), lambda b: (b, 0))

    grid_spec = pltpu.PrefetchScalarGridSpec(
        num_scalar_prefetch=0,
        grid=(grid,),
        in_specs=in_specs,
        out_specs=out_spec,
    )

    # --- VMEM plan (feedback #5/#6): include double-buffered I/O blocks, the
    # resident weights, and the f32 intermediates; cap per-generation.
    block_bytes = tb * SD * x.dtype.itemsize
    weight_bytes = sum(int(math.prod(a.shape)) * a.dtype.itemsize
                       for a in weight_args)
    interm_bytes = tb * 4 * (6 * SD + DH + SH)
    est = 4 * block_bytes + 2 * weight_bytes + interm_bytes
    try:
        cap = int(pltpu.get_tpu_info().vmem_capacity_bytes)
    except Exception:
        cap = 128 * 2**20
    ceiling = 48 * 2**20 if cap <= 64 * 2**20 else 96 * 2**20
    vmem_limit = int(min(ceiling, max(16 * 2**20, 2 * est)))

    out = pl.pallas_call(
        tsmixer_kernel,
        out_shape=jax.ShapeDtypeStruct((b_pad, SD), x.dtype),
        grid_spec=grid_spec,
        compiler_params=pltpu.CompilerParams(
            dimension_semantics=("parallel",),
            vmem_limit_bytes=vmem_limit),
    )(xr, *weight_args)

    return out[:B].reshape(B, S, D)


def tsmixer_ref(x, p):
    """Pure-JAX f32 reference mirroring the PyTorch forward (dropout=identity,
    exact erf GELU)."""
    def ln(v, g, b):
        mu = jnp.mean(v, axis=-1, keepdims=True)
        var = jnp.mean((v - mu) ** 2, axis=-1, keepdims=True)
        return (v - mu) / jnp.sqrt(var + LN_EPS) * g + b

    residual = x
    y = ln(x, p["g1"], p["be1"])
    y = jnp.swapaxes(y, 1, 2)
    y = jax.nn.gelu(y @ p["w1"] + p["b1"], approximate=False)
    y = y @ p["w2"] + p["b2"]
    y = jnp.swapaxes(y, 1, 2)
    x = y + residual
    residual = x
    z = ln(x, p["g2"], p["be2"])
    z = jax.nn.gelu(z @ p["w3"] + p["b3"], approximate=False)
    z = z @ p["w4"] + p["b4"]
    return z + residual


if __name__ == "__main__":
    B, S, D, H = 32, 16, 16, 32    # module requires seq_len == input_dim
    key = jax.random.PRNGKey(0)
    kx, kp = jax.random.split(key)
    x = jax.random.normal(kx, (B, S, D), jnp.float32)

    raw = init_params(kp, input_dim=D, hidden_dim=H)
    packed = pack_params(raw, seq_len=S)

    out = tsmixer_layer(x, packed, block_batch=8)   # grid=(4,): 2 steps / v7x TC
    jax.block_until_ready(out)

    ref = tsmixer_ref(x, raw)
    assert out.shape == (B, S, D)
    # bf16 matmul operands + tanh-approx GELU vs the all-f32 erf reference.
    err = float(jnp.max(jnp.abs(out - ref)))
    assert jnp.allclose(out, ref, atol=2e-2, rtol=2e-2), err

    print("KERNEL_OK")
</pallas_src>

<mosaic_0001>
module attributes {stable_mosaic.version = 11 : i64} {
  func.func @tsmixer_kernel(%arg0: i32, %arg1: memref<8x256xf32, #tpu.memory_space<vmem>>, %arg2: memref<256x256xf32, #tpu.memory_space<vmem>>, %arg3: memref<256x512xbf16, #tpu.memory_space<vmem>>, %arg4: memref<1x512xf32, #tpu.memory_space<vmem>>, %arg5: memref<512x256xbf16, #tpu.memory_space<vmem>>, %arg6: memref<1x256xf32, #tpu.memory_space<vmem>>, %arg7: memref<256x512xbf16, #tpu.memory_space<vmem>>, %arg8: memref<1x512xf32, #tpu.memory_space<vmem>>, %arg9: memref<512x256xbf16, #tpu.memory_space<vmem>>, %arg10: memref<1x256xf32, #tpu.memory_space<vmem>>, %arg11: memref<1x256xf32, #tpu.memory_space<vmem>>, %arg12: memref<1x256xf32, #tpu.memory_space<vmem>>, %arg13: memref<1x256xf32, #tpu.memory_space<vmem>>, %arg14: memref<1x256xf32, #tpu.memory_space<vmem>>, %arg15: memref<8x256xf32, #tpu.memory_space<vmem>>) attributes {dimension_semantics = [#tpu.dimension_semantics<parallel>], iteration_bounds = array<i64: 4>, scalar_prefetch = 0 : i64, scratch_operands = 0 : i64, tpu.core_type = #tpu.core_type<tc>, window_params = [{transform_indices = @transform_0, window_bounds = array<i64: 8, 256>}, {pipeline_mode = #tpu.pipeline_mode<synchronous>, transform_indices = @transform_1, window_bounds = array<i64: 256, 256>}, {pipeline_mode = #tpu.pipeline_mode<synchronous>, transform_indices = @transform_2, window_bounds = array<i64: 256, 512>}, {pipeline_mode = #tpu.pipeline_mode<synchronous>, transform_indices = @transform_3, window_bounds = array<i64: 1, 512>}, {pipeline_mode = #tpu.pipeline_mode<synchronous>, transform_indices = @transform_4, window_bounds = array<i64: 512, 256>}, {pipeline_mode = #tpu.pipeline_mode<synchronous>, transform_indices = @transform_5, window_bounds = array<i64: 1, 256>}, {pipeline_mode = #tpu.pipeline_mode<synchronous>, transform_indices = @transform_6, window_bounds = array<i64: 256, 512>}, {pipeline_mode = #tpu.pipeline_mode<synchronous>, transform_indices = @transform_7, window_bounds = array<i64: 1, 512>}, {pipeline_mode = #tpu.pipeline_mode<synchronous>, transform_indices = @transform_8, window_bounds = array<i64: 512, 256>}, {pipeline_mode = #tpu.pipeline_mode<synchronous>, transform_indices = @transform_9, window_bounds = array<i64: 1, 256>}, {pipeline_mode = #tpu.pipeline_mode<synchronous>, transform_indices = @transform_10, window_bounds = array<i64: 1, 256>}, {pipeline_mode = #tpu.pipeline_mode<synchronous>, transform_indices = @transform_11, window_bounds = array<i64: 1, 256>}, {pipeline_mode = #tpu.pipeline_mode<synchronous>, transform_indices = @transform_12, window_bounds = array<i64: 1, 256>}, {pipeline_mode = #tpu.pipeline_mode<synchronous>, transform_indices = @transform_13, window_bounds = array<i64: 1, 256>}, {transform_indices = @transform_14, window_bounds = array<i64: 8, 256>}]} {
    %c0 = arith.constant 0 : index
    %c0_0 = arith.constant 0 : index
    %0 = vector.load %arg1[%c0, %c0_0] : memref<8x256xf32, #tpu.memory_space<vmem>>, vector<8x256xf32>
    %c0_1 = arith.constant 0 : index
    %c0_2 = arith.constant 0 : index
    %1 = vector.load %arg2[%c0_1, %c0_2] : memref<256x256xf32, #tpu.memory_space<vmem>>, vector<256x256xf32>
    %c0_3 = arith.constant 0 : index
    %c0_4 = arith.constant 0 : index
    %2 = vector.load %arg11[%c0_3, %c0_4] : memref<1x256xf32, #tpu.memory_space<vmem>>, vector<1x256xf32>
    %c0_5 = arith.constant 0 : index
    %c0_6 = arith.constant 0 : index
    %3 = vector.load %arg12[%c0_5, %c0_6] : memref<1x256xf32, #tpu.memory_space<vmem>>, vector<1x256xf32>
    %cst = arith.constant dense<0.000000e+00> : vector<8x256xf32>
    %4 = tpu.matmul %0, %1, %cst {dimension_numbers = #tpu.dot_dimension_numbers<[1], [0], [0], [1], [0, 0, 1, 1], [], []>} : vector<8x256xf32>, vector<256x256xf32>, vector<8x256xf32> -> vector<8x256xf32>
    %5 = arith.mulf %0, %0 : vector<8x256xf32>
    %cst_7 = arith.constant dense<0.000000e+00> : vector<8x256xf32>
    %6 = tpu.matmul %5, %1, %cst_7 {dimension_numbers = #tpu.dot_dimension_numbers<[1], [0], [0], [1], [0, 0, 1, 1], [], []>} : vector<8x256xf32>, vector<256x256xf32>, vector<8x256xf32> -> vector<8x256xf32>
    %7 = arith.mulf %4, %4 : vector<8x256xf32>
    %8 = arith.subf %6, %7 : vector<8x256xf32>
    %cst_8 = arith.constant 9.99999974E-6 : f32
    %9 = vector.broadcast %cst_8 : f32 to vector<8x256xf32>
    %10 = arith.addf %8, %9 : vector<8x256xf32>
    %11 = math.rsqrt %10 : vector<8x256xf32>
    %12 = vector.broadcast %2 : vector<1x256xf32> to vector<8x256xf32>
    %13 = arith.mulf %12, %11 : vector<8x256xf32>
    %14 = arith.mulf %0, %13 : vector<8x256xf32>
    %15 = arith.mulf %4, %13 : vector<8x256xf32>
    %16 = vector.broadcast %3 : vector<1x256xf32> to vector<8x256xf32>
    %17 = arith.subf %16, %15 : vector<8x256xf32>
    %18 = arith.addf %14, %17 : vector<8x256xf32>
    %19 = arith.truncf %18 : vector<8x256xf32> to vector<8x256xbf16>
    %c0_9 = arith.constant 0 : index
    %c0_10 = arith.constant 0 : index
    %20 = vector.load %arg3[%c0_9, %c0_10] : memref<256x512xbf16, #tpu.memory_space<vmem>>, vector<256x512xbf16>
    %cst_11 = arith.constant dense<0.000000e+00> : vector<8x512xf32>
    %21 = tpu.matmul %19, %20, %cst_11 {dimension_numbers = #tpu.dot_dimension_numbers<[1], [0], [0], [1], [0, 0, 1, 1], [], []>} : vector<8x256xbf16>, vector<256x512xbf16>, vector<8x512xf32> -> vector<8x512xf32>
    %c0_12 = arith.constant 0 : index
    %c0_13 = arith.constant 0 : index
    %22 = vector.load %arg4[%c0_12, %c0_13] : memref<1x512xf32, #tpu.memory_space<vmem>>, vector<1x512xf32>
    %23 = vector.broadcast %22 : vector<1x512xf32> to vector<8x512xf32>
    %24 = arith.addf %21, %23 : vector<8x512xf32>
    %cst_14 = arith.constant 5.000000e-01 : f32
    %25 = vector.broadcast %cst_14 : f32 to vector<8x512xf32>
    %26 = arith.mulf %25, %24 : vector<8x512xf32>
    %cst_15 = arith.constant 4.471500e-02 : f32
    %27 = vector.broadcast %cst_15 : f32 to vector<8x512xf32>
    %28 = arith.mulf %27, %24 : vector<8x512xf32>
    %29 = arith.mulf %28, %24 : vector<8x512xf32>
    %30 = arith.mulf %29, %24 : vector<8x512xf32>
    %31 = arith.addf %24, %30 : vector<8x512xf32>
    %cst_16 = arith.constant 0.797884583 : f32
    %32 = vector.broadcast %cst_16 : f32 to vector<8x512xf32>
    %33 = arith.mulf %32, %31 : vector<8x512xf32>
    %34 = math.tanh %33 : vector<8x512xf32>
    %cst_17 = arith.constant 1.000000e+00 : f32
    %35 = vector.broadcast %cst_17 : f32 to vector<8x512xf32>
    %36 = arith.addf %35, %34 : vector<8x512xf32>
    %37 = arith.mulf %26, %36 : vector<8x512xf32>
    %38 = arith.truncf %37 : vector<8x512xf32> to vector<8x512xbf16>
    %c0_18 = arith.constant 0 : index
    %c0_19 = arith.constant 0 : index
    %39 = vector.load %arg5[%c0_18, %c0_19] : memref<512x256xbf16, #tpu.memory_space<vmem>>, vector<512x256xbf16>
    %cst_20 = arith.constant dense<0.000000e+00> : vector<8x256xf32>
    %40 = tpu.matmul %38, %39, %cst_20 {dimension_numbers = #tpu.dot_dimension_numbers<[1], [0], [0], [1], [0, 0, 1, 1], [], []>} : vector<8x512xbf16>, vector<512x256xbf16>, vector<8x256xf32> -> vector<8x256xf32>
    %c0_21 = arith.constant 0 : index
    %c0_22 = arith.constant 0 : index
    %41 = vector.load %arg6[%c0_21, %c0_22] : memref<1x256xf32, #tpu.memory_space<vmem>>, vector<1x256xf32>
    %42 = vector.broadcast %41 : vector<1x256xf32> to vector<8x256xf32>
    %43 = arith.addf %40, %42 : vector<8x256xf32>
    %44 = arith.addf %0, %43 : vector<8x256xf32>
    %c0_23 = arith.constant 0 : index
    %c0_24 = arith.constant 0 : index
    %45 = vector.load %arg13[%c0_23, %c0_24] : memref<1x256xf32, #tpu.memory_space<vmem>>, vector<1x256xf32>
    %c0_25 = arith.constant 0 : index
    %c0_26 = arith.constant 0 : index
    %46 = vector.load %arg14[%c0_25, %c0_26] : memref<1x256xf32, #tpu.memory_space<vmem>>, vector<1x256xf32>
    %cst_27 = arith.constant dense<0.000000e+00> : vector<8x256xf32>
    %47 = tpu.matmul %44, %1, %cst_27 {dimension_numbers = #tpu.dot_dimension_numbers<[1], [0], [0], [1], [0, 0, 1, 1], [], []>} : vector<8x256xf32>, vector<256x256xf32>, vector<8x256xf32> -> vector<8x256xf32>
    %48 = arith.mulf %44, %44 : vector<8x256xf32>
    %cst_28 = arith.constant dense<0.000000e+00> : vector<8x256xf32>
    %49 = tpu.matmul %48, %1, %cst_28 {dimension_numbers = #tpu.dot_dimension_numbers<[1], [0], [0], [1], [0, 0, 1, 1], [], []>} : vector<8x256xf32>, vector<256x256xf32>, vector<8x256xf32> -> vector<8x256xf32>
    %50 = arith.mulf %47, %47 : vector<8x256xf32>
    %51 = arith.subf %49, %50 : vector<8x256xf32>
    %cst_29 = arith.constant 9.99999974E-6 : f32
    %52 = vector.broadcast %cst_29 : f32 to vector<8x256xf32>
    %53 = arith.addf %51, %52 : vector<8x256xf32>
    %54 = math.rsqrt %53 : vector<8x256xf32>
    %55 = vector.broadcast %45 : vector<1x256xf32> to vector<8x256xf32>
    %56 = arith.mulf %55, %54 : vector<8x256xf32>
    %57 = arith.mulf %44, %56 : vector<8x256xf32>
    %58 = arith.mulf %47, %56 : vector<8x256xf32>
    %59 = vector.broadcast %46 : vector<1x256xf32> to vector<8x256xf32>
    %60 = arith.subf %59, %58 : vector<8x256xf32>
    %61 = arith.addf %57, %60 : vector<8x256xf32>
    %62 = arith.truncf %61 : vector<8x256xf32> to vector<8x256xbf16>
    %c0_30 = arith.constant 0 : index
    %c0_31 = arith.constant 0 : index
    %63 = vector.load %arg7[%c0_30, %c0_31] : memref<256x512xbf16, #tpu.memory_space<vmem>>, vector<256x512xbf16>
    %cst_32 = arith.constant dense<0.000000e+00> : vector<8x512xf32>
    %64 = tpu.matmul %62, %63, %cst_32 {dimension_numbers = #tpu.dot_dimension_numbers<[1], [0], [0], [1], [0, 0, 1, 1], [], []>} : vector<8x256xbf16>, vector<256x512xbf16>, vector<8x512xf32> -> vector<8x512xf32>
    %c0_33 = arith.constant 0 : index
    %c0_34 = arith.constant 0 : index
    %65 = vector.load %arg8[%c0_33, %c0_34] : memref<1x512xf32, #tpu.memory_space<vmem>>, vector<1x512xf32>
    %66 = vector.broadcast %65 : vector<1x512xf32> to vector<8x512xf32>
    %67 = arith.addf %64, %66 : vector<8x512xf32>
    %cst_35 = arith.constant 5.000000e-01 : f32
    %68 = vector.broadcast %cst_35 : f32 to vector<8x512xf32>
    %69 = arith.mulf %68, %67 : vector<8x512xf32>
    %cst_36 = arith.constant 4.471500e-02 : f32
    %70 = vector.broadcast %cst_36 : f32 to vector<8x512xf32>
    %71 = arith.mulf %70, %67 : vector<8x512xf32>
    %72 = arith.mulf %71, %67 : vector<8x512xf32>
    %73 = arith.mulf %72, %67 : vector<8x512xf32>
    %74 = arith.addf %67, %73 : vector<8x512xf32>
    %cst_37 = arith.constant 0.797884583 : f32
    %75 = vector.broadcast %cst_37 : f32 to vector<8x512xf32>
    %76 = arith.mulf %75, %74 : vector<8x512xf32>
    %77 = math.tanh %76 : vector<8x512xf32>
    %cst_38 = arith.constant 1.000000e+00 : f32
    %78 = vector.broadcast %cst_38 : f32 to vector<8x512xf32>
    %79 = arith.addf %78, %77 : vector<8x512xf32>
    %80 = arith.mulf %69, %79 : vector<8x512xf32>
    %81 = arith.truncf %80 : vector<8x512xf32> to vector<8x512xbf16>
    %c0_39 = arith.constant 0 : index
    %c0_40 = arith.constant 0 : index
    %82 = vector.load %arg9[%c0_39, %c0_40] : memref<512x256xbf16, #tpu.memory_space<vmem>>, vector<512x256xbf16>
    %cst_41 = arith.constant dense<0.000000e+00> : vector<8x256xf32>
    %83 = tpu.matmul %81, %82, %cst_41 {dimension_numbers = #tpu.dot_dimension_numbers<[1], [0], [0], [1], [0, 0, 1, 1], [], []>} : vector<8x512xbf16>, vector<512x256xbf16>, vector<8x256xf32> -> vector<8x256xf32>
    %c0_42 = arith.constant 0 : index
    %c0_43 = arith.constant 0 : index
    %84 = vector.load %arg10[%c0_42, %c0_43] : memref<1x256xf32, #tpu.memory_space<vmem>>, vector<1x256xf32>
    %85 = vector.broadcast %84 : vector<1x256xf32> to vector<8x256xf32>
    %86 = arith.addf %83, %85 : vector<8x256xf32>
    %87 = arith.addf %44, %86 : vector<8x256xf32>
    %c0_44 = arith.constant 0 : index
    %c0_45 = arith.constant 0 : index
    %88 = vector.load %arg15[%c0_44, %c0_45] : memref<8x256xf32, #tpu.memory_space<vmem>>, vector<8x256xf32>
    tpu.vector_store %arg15[%c0_44, %c0_45], %87 {strides = array<i32>} : memref<8x256xf32, #tpu.memory_space<vmem>>, vector<8x256xf32>,
    return
  }
  func.func @transform_0(%arg0: i32) -> (i32, i32) {
    %c0_i32 = arith.constant 0 : i32
    %c0_i32_0 = arith.constant 0 : i32
    return %arg0, %c0_i32 : i32, i32
  }
  func.func @transform_1(%arg0: i32) -> (i32, i32) {
    %c0_i32 = arith.constant 0 : i32
    %c0_i32_0 = arith.constant 0 : i32
    %c0_i32_1 = arith.constant 0 : i32
    return %c0_i32, %c0_i32_0 : i32, i32
  }
  func.func @transform_2(%arg0: i32) -> (i32, i32) {
    %c0_i32 = arith.constant 0 : i32
    %c0_i32_0 = arith.constant 0 : i32
    %c0_i32_1 = arith.constant 0 : i32
    return %c0_i32, %c0_i32_0 : i32, i32
  }
  func.func @transform_3(%arg0: i32) -> (i32, i32) {
    %c0_i32 = arith.constant 0 : i32
    %c0_i32_0 = arith.constant 0 : i32
    %c0_i32_1 = arith.constant 0 : i32
    return %c0_i32, %c0_i32_0 : i32, i32
  }
  func.func @transform_4(%arg0: i32) -> (i32, i32) {
    %c0_i32 = arith.constant 0 : i32
    %c0_i32_0 = arith.constant 0 : i32
    %c0_i32_1 = arith.constant 0 : i32
    return %c0_i32, %c0_i32_0 : i32, i32
  }
  func.func @transform_5(%arg0: i32) -> (i32, i32) {
    %c0_i32 = arith.constant 0 : i32
    %c0_i32_0 = arith.constant 0 : i32
    %c0_i32_1 = arith.constant 0 : i32
    return %c0_i32, %c0_i32_0 : i32, i32
  }
  func.func @transform_6(%arg0: i32) -> (i32, i32) {
    %c0_i32 = arith.constant 0 : i32
    %c0_i32_0 = arith.constant 0 : i32
    %c0_i32_1 = arith.constant 0 : i32
    return %c0_i32, %c0_i32_0 : i32, i32
  }
  func.func @transform_7(%arg0: i32) -> (i32, i32) {
    %c0_i32 = arith.constant 0 : i32
    %c0_i32_0 = arith.constant 0 : i32
    %c0_i32_1 = arith.constant 0 : i32
    return %c0_i32, %c0_i32_0 : i32, i32
  }
  func.func @transform_8(%arg0: i32) -> (i32, i32) {
    %c0_i32 = arith.constant 0 : i32
    %c0_i32_0 = arith.constant 0 : i32
    %c0_i32_1 = arith.constant 0 : i32
    return %c0_i32, %c0_i32_0 : i32, i32
  }
  func.func @transform_9(%arg0: i32) -> (i32, i32) {
    %c0_i32 = arith.constant 0 : i32
    %c0_i32_0 = arith.constant 0 : i32
    %c0_i32_1 = arith.constant 0 : i32
    return %c0_i32, %c0_i32_0 : i32, i32
  }
  func.func @transform_10(%arg0: i32) -> (i32, i32) {
    %c0_i32 = arith.constant 0 : i32
    %c0_i32_0 = arith.constant 0 : i32
    %c0_i32_1 = arith.constant 0 : i32
    return %c0_i32, %c0_i32_0 : i32, i32
  }
  func.func @transform_11(%arg0: i32) -> (i32, i32) {
    %c0_i32 = arith.constant 0 : i32
    %c0_i32_0 = arith.constant 0 : i32
    %c0_i32_1 = arith.constant 0 : i32
    return %c0_i32, %c0_i32_0 : i32, i32
  }
  func.func @transform_12(%arg0: i32) -> (i32, i32) {
    %c0_i32 = arith.constant 0 : i32
    %c0_i32_0 = arith.constant 0 : i32
    %c0_i32_1 = arith.constant 0 : i32
    return %c0_i32, %c0_i32_0 : i32, i32
  }
  func.func @transform_13(%arg0: i32) -> (i32, i32) {
    %c0_i32 = arith.constant 0 : i32
    %c0_i32_0 = arith.constant 0 : i32
    %c0_i32_1 = arith.constant 0 : i32
    return %c0_i32, %c0_i32_0 : i32, i32
  }
  func.func @transform_14(%arg0: i32) -> (i32, i32) {
    %c0_i32 = arith.constant 0 : i32
    %c0_i32_0 = arith.constant 0 : i32
    return %arg0, %c0_i32 : i32, i32
  }
}

</mosaic_0001>

<llo_original>
// kernel: tpu_custom_call.1
$region0: #{tpu_custom_call.1}
  #allocation0 [shape = 'u32[]', space=smem, size = 0x4, offset = 0x4, fixed_abs, tag = 'smem constant byte address 0x4 - core index']
  #allocation1 [shape = 'u32[144,128]{1,0:T(1,128)}', space=vmem, size = 0x12000, scoped, tag = 'internal scratch']
  %s0 = inlined_call_operand.hbm [shape: f32[32,256], index: 0, kind: input, shape index: {}]
  %s1 = inlined_call_operand.hbm [shape: f32[256,256], index: 1, kind: input, shape index: {}]
  %s2 = inlined_call_operand.hbm [shape: bf16[256,512], index: 2, kind: input, shape index: {}]
  %s3 = inlined_call_operand.vmem [shape: f32[1,512], index: 3, kind: input, shape index: {}]
  %s4 = inlined_call_operand.hbm [shape: bf16[512,256], index: 4, kind: input, shape index: {}]
  %s5 = inlined_call_operand.vmem [shape: f32[1,256], index: 5, kind: input, shape index: {}]
  %s6 = inlined_call_operand.hbm [shape: bf16[256,512], index: 6, kind: input, shape index: {}]
  %s7 = inlined_call_operand.vmem [shape: f32[1,512], index: 7, kind: input, shape index: {}]
  %s8 = inlined_call_operand.hbm [shape: bf16[512,256], index: 8, kind: input, shape index: {}]
  %s9 = inlined_call_operand.vmem [shape: f32[1,256], index: 9, kind: input, shape index: {}]
  %s10 = inlined_call_operand.vmem [shape: f32[1,256], index: 10, kind: input, shape index: {}]
  %s11 = inlined_call_operand.vmem [shape: f32[1,256], index: 11, kind: input, shape index: {}]
  %s12 = inlined_call_operand.vmem [shape: f32[1,256], index: 12, kind: input, shape index: {}]
  %s13 = inlined_call_operand.vmem [shape: f32[1,256], index: 13, kind: input, shape index: {}]
  %s14 = inlined_call_operand.hbm [shape: f32[32,256], index: 14, kind: output, shape index: {}]
  %s15 = sld [smem:[#allocation0]]
  $region113: #{tpu_custom_call.1} parent=0
    _
  %s17 = ssub.s32 1, %s15
  %s18 = scalar_select 0, %s17, %s15
  $region1: #{tpu_custom_call.1} parent=0
    #allocation2 [shape = 'u8[16384]{0}', space=vmem, size = 0x4000, scoped, tag = 'input window, operand 0']
    #allocation3 [shape = 's32[2]{0}', space=sflag, size = 0x8, scoped, tag = 'scoped memory for tpu_custom_call.1']
    #allocation4 [shape = 's32[2]{0}', space=sflag, size = 0x8, scoped, tag = 'scoped memory for tpu_custom_call.1']
    #allocation5 [shape = 'u8[262144]{0}', space=vmem, size = 0x40000, scoped, tag = 'input window, operand 1, single buffered']
    #allocation6 [shape = 's32[1]{0}', space=sflag, size = 0x4, scoped, tag = 'scoped memory for tpu_custom_call.1']
    #allocation7 [shape = 'u8[262144]{0}', space=vmem, size = 0x40000, scoped, tag = 'input window, operand 2, single buffered']
    #allocation8 [shape = 'u8[262144]{0}', space=vmem, size = 0x40000, scoped, tag = 'input window, operand 4, single buffered']
    #allocation9 [shape = 's32[1]{0}', space=sflag, size = 0x4, scoped, tag = 'scoped memory for tpu_custom_call.1']
    #allocation10 [shape = 'u8[262144]{0}', space=vmem, size = 0x40000, scoped, tag = 'input window, operand 6, single buffered']
    #allocation11 [shape = 'u8[262144]{0}', space=vmem, size = 0x40000, scoped, tag = 'input window, operand 8, single buffered']
    #allocation12 [shape = 's32[1]{0}', space=sflag, size = 0x4, scoped, tag = 'scoped memory for tpu_custom_call.1']
    #allocation13 [shape = 'u8[16384]{0}', space=vmem, size = 0x4000, scoped, tag = 'output window, operand 0']
    %19 = vsyncpa [#allocation3], 0
    %s20 = scalar_lea.sflag [#allocation3], 1
    %21 = vsyncpa %s20, 0
    %22 = vsyncpa [#allocation6], 0
    %23 = vsyncpa [#allocation9], 0
    %24 = vsyncpa [#allocation12], 0
    %25 = vsyncpa [#allocation4], 0
    %s26 = scalar_lea.sflag [#allocation4], 1
    %27 = vsyncpa %s26, 0
    loop: start=0, step=1, limit=6
    $region2: #{tpu_custom_call.1} parent=1 // loop_pre_header
      _
    $region3: #{tpu_custom_call.1} parent=1 // loop_header
      %s29 = sphi 0, %s33
      %p30 = scmp.ge.s32.totalorder %s29, 6
      %s39 = sphi 0, %s41
      %s42 = sphi 0, %s39
      %s43 = sphi 0, %s42
      %s59 = sphi 0, %s43
      %s63 = sphi 0, %s63
      %s65 = sphi 0, %s63
      %s66 = sphi 0, %s65
      %s80 = sphi 0, %s66
      %s84 = sphi 0, %s84
      %s86 = sphi 0, %s84
      %s87 = sphi 0, %s86
      %s101 = sphi 0, %s87
      %s105 = sphi 0, %s105
      %s107 = sphi 0, %s105
      %s108 = sphi 0, %s107
      %s122 = sphi 0, %s108
      %s126 = sphi 0, %s126
      %s128 = sphi 0, %s126
      %s129 = sphi 0, %s128
      %s143 = sphi 0, %s129
      %s147 = sphi 0, %s147
      %s149 = sphi 0, %s147
      %s150 = sphi 0, %s149
      %s164 = sphi 0, %s150
      %s168 = sphi 0, %s168
      %s170 = sphi 0, %s168
      %s171 = sphi 0, %s170
      %s185 = sphi 0, %s171
      %s189 = sphi 0, %s189
      %s191 = sphi 0, %s189
      %s192 = sphi 0, %s191
      %s206 = sphi 0, %s192
      %s210 = sphi 0, %s210
      %s212 = sphi 0, %s210
      %s213 = sphi 0, %s212
      %s227 = sphi 0, %s213
      %s231 = sphi 0, %s231
      %s233 = sphi 0, %s231
      %s234 = sphi 0, %s233
      %s248 = sphi 0, %s234
      %s252 = sphi 0, %s252
      %s254 = sphi 0, %s252
      %s255 = sphi 0, %s254
      %s269 = sphi 0, %s255
      %s273 = sphi 0, %s273
      %s275 = sphi 0, %s273
      %s276 = sphi 0, %s275
      %s290 = sphi 0, %s276
      %s294 = sphi 0, %s294
      %s296 = sphi 0, %s294
      %s297 = sphi 0, %s296
      %s311 = sphi 0, %s297
      %s315 = sphi 0, %s315
      %s317 = sphi 0, %s315
      %s318 = sphi 0, %s317
      %s332 = sphi 0, %s318
      %s338 = sphi 0, %s340
      %s341 = sphi 0, %s338
      %s342 = sphi 0, %s341
      %s358 = sphi 0, %s342
    $region4: #{tpu_custom_call.1} parent=1 // loop_header_branch
      %32 = sbr.rel (%p30) target = $region8
    $region5: #{tpu_custom_call.1} parent=1 // loop_body
      %s34 = ssub.s32 %s29, 1
      %s35 = ssub.s32 %s29, 2
      %s36 = sadd.s32 %s29, 1
      %s37 = ssub.s32 %s29, %s36
      %p38 = scmp.eq.s32.totalorder %s37, 0
      %s40 = sadd.s32 %s39, 1
      %s41 = scalar_select %p38, %s39, %s40
      %p44 = pneg %p38
      %p45 = scmp.eq.s32.totalorder %s29, 3
      %p46 = por %p44, %p45
      %p47 = scmp.ne.s32.totalorder %s39, %s42
      %p48 = scmp.eq.s32.totalorder %s29, 0
      %p49 = por %p47, %p48
      %p50 = scmp.ne.s32.totalorder %s39, %s42
      %p51 = scmp.eq.s32.totalorder %s34, 3
      %p52 = por %p50, %p51
      %p53 = scmp.ne.s32.totalorder %s42, %s43
      %p54 = scmp.eq.s32.totalorder %s34, 0
      %p55 = por %p53, %p54
      %p56 = scmp.ne.s32.totalorder %s42, %s43
      %p57 = scmp.eq.s32.totalorder %s35, 3
      %p58 = por %p56, %p57
      %p60 = scmp.ne.s32.totalorder %s43, %s59
      %p61 = scmp.eq.s32.totalorder %s35, 0
      %p62 = por %p60, %p61
      %s64 = sadd.s32 %s63, 1
      %p67 = scmp.eq.s32.totalorder %s29, 3
      %p68 = scmp.ne.s32.totalorder %s63, %s65
      %p69 = scmp.eq.s32.totalorder %s29, 0
      %p70 = por %p68, %p69
      %p71 = scmp.ne.s32.totalorder %s63, %s65
      %p72 = scmp.eq.s32.totalorder %s34, 3
      %p73 = por %p71, %p72
      %p74 = scmp.ne.s32.totalorder %s65, %s66
      %p75 = scmp.eq.s32.totalorder %s34, 0
      %p76 = por %p74, %p75
      %p77 = scmp.ne.s32.totalorder %s65, %s66
      %p78 = scmp.eq.s32.totalorder %s35, 3
      %p79 = por %p77, %p78
      %p81 = scmp.ne.s32.totalorder %s66, %s80
      %p82 = scmp.eq.s32.totalorder %s35, 0
      %p83 = por %p81, %p82
      %s85 = sadd.s32 %s84, 1
      %p88 = scmp.eq.s32.totalorder %s29, 3
      %p89 = scmp.ne.s32.totalorder %s84, %s86
      %p90 = scmp.eq.s32.totalorder %s29, 0
      %p91 = por %p89, %p90
      %p92 = scmp.ne.s32.totalorder %s84, %s86
      %p93 = scmp.eq.s32.totalorder %s34, 3
      %p94 = por %p92, %p93
      %p95 = scmp.ne.s32.totalorder %s86, %s87
      %p96 = scmp.eq.s32.totalorder %s34, 0
      %p97 = por %p95, %p96
      %p98 = scmp.ne.s32.totalorder %s86, %s87
      %p99 = scmp.eq.s32.totalorder %s35, 3
      %p100 = por %p98, %p99
      %p102 = scmp.ne.s32.totalorder %s87, %s101
      %p103 = scmp.eq.s32.totalorder %s35, 0
      %p104 = por %p102, %p103
      %s106 = sadd.s32 %s105, 1
      %p109 = scmp.eq.s32.totalorder %s29, 3
      %p110 = scmp.ne.s32.totalorder %s105, %s107
      %p111 = scmp.eq.s32.totalorder %s29, 0
      %p112 = por %p110, %p111
      %p113 = scmp.ne.s32.totalorder %s105, %s107
      %p114 = scmp.eq.s32.totalorder %s34, 3
      %p115 = por %p113, %p114
      %p116 = scmp.ne.s32.totalorder %s107, %s108
      %p117 = scmp.eq.s32.totalorder %s34, 0
      %p118 = por %p116, %p117
      %p119 = scmp.ne.s32.totalorder %s107, %s108
      %p120 = scmp.eq.s32.totalorder %s35, 3
      %p121 = por %p119, %p120
      %p123 = scmp.ne.s32.totalorder %s108, %s122
      %p124 = scmp.eq.s32.totalorder %s35, 0
      %p125 = por %p123, %p124
      %s127 = sadd.s32 %s126, 1
      %p130 = scmp.eq.s32.totalorder %s29, 3
      %p131 = scmp.ne.s32.totalorder %s126, %s128
      %p132 = scmp.eq.s32.totalorder %s29, 0
      %p133 = por %p131, %p132
      %p134 = scmp.ne.s32.totalorder %s126, %s128
      %p135 = scmp.eq.s32.totalorder %s34, 3
      %p136 = por %p134, %p135
      %p137 = scmp.ne.s32.totalorder %s128, %s129
      %p138 = scmp.eq.s32.totalorder %s34, 0
      %p139 = por %p137, %p138
      %p140 = scmp.ne.s32.totalorder %s128, %s129
      %p141 = scmp.eq.s32.totalorder %s35, 3
      %p142 = por %p140, %p141
      %p144 = scmp.ne.s32.totalorder %s129, %s143
      %p145 = scmp.eq.s32.totalorder %s35, 0
      %p146 = por %p144, %p145
      %s148 = sadd.s32 %s147, 1
      %p151 = scmp.eq.s32.totalorder %s29, 3
      %p152 = scmp.ne.s32.totalorder %s147, %s149
      %p153 = scmp.eq.s32.totalorder %s29, 0
      %p154 = por %p152, %p153
      %p155 = scmp.ne.s32.totalorder %s147, %s149
      %p156 = scmp.eq.s32.totalorder %s34, 3
      %p157 = por %p155, %p156
      %p158 = scmp.ne.s32.totalorder %s149, %s150
      %p159 = scmp.eq.s32.totalorder %s34, 0
      %p160 = por %p158, %p159
      %p161 = scmp.ne.s32.totalorder %s149, %s150
      %p162 = scmp.eq.s32.totalorder %s35, 3
      %p163 = por %p161, %p162
      %p165 = scmp.ne.s32.totalorder %s150, %s164
      %p166 = scmp.eq.s32.totalorder %s35, 0
      %p167 = por %p165, %p166
      %s169 = sadd.s32 %s168, 1
      %p172 = scmp.eq.s32.totalorder %s29, 3
      %p173 = scmp.ne.s32.totalorder %s168, %s170
      %p174 = scmp.eq.s32.totalorder %s29, 0
      %p175 = por %p173, %p174
      %p176 = scmp.ne.s32.totalorder %s168, %s170
      %p177 = scmp.eq.s32.totalorder %s34, 3
      %p178 = por %p176, %p177
      %p179 = scmp.ne.s32.totalorder %s170, %s171
      %p180 = scmp.eq.s32.totalorder %s34, 0
      %p181 = por %p179, %p180
      %p182 = scmp.ne.s32.totalorder %s170, %s171
      %p183 = scmp.eq.s32.totalorder %s35, 3
      %p184 = por %p182, %p183
      %p186 = scmp.ne.s32.totalorder %s171, %s185
      %p187 = scmp.eq.s32.totalorder %s35, 0
      %p188 = por %p186, %p187
      %s190 = sadd.s32 %s189, 1
      %p193 = scmp.eq.s32.totalorder %s29, 3
      %p194 = scmp.ne.s32.totalorder %s189, %s191
      %p195 = scmp.eq.s32.totalorder %s29, 0
      %p196 = por %p194, %p195
      %p197 = scmp.ne.s32.totalorder %s189, %s191
      %p198 = scmp.eq.s32.totalorder %s34, 3
      %p199 = por %p197, %p198
      %p200 = scmp.ne.s32.totalorder %s191, %s192
      %p201 = scmp.eq.s32.totalorder %s34, 0
      %p202 = por %p200, %p201
      %p203 = scmp.ne.s32.totalorder %s191, %s192
      %p204 = scmp.eq.s32.totalorder %s35, 3
      %p205 = por %p203, %p204
      %p207 = scmp.ne.s32.totalorder %s192, %s206
      %p208 = scmp.eq.s32.totalorder %s35, 0
      %p209 = por %p207, %p208
      %s211 = sadd.s32 %s210, 1
      %p214 = scmp.eq.s32.totalorder %s29, 3
      %p215 = scmp.ne.s32.totalorder %s210, %s212
      %p216 = scmp.eq.s32.totalorder %s29, 0
      %p217 = por %p215, %p216
      %p218 = scmp.ne.s32.totalorder %s210, %s212
      %p219 = scmp.eq.s32.totalorder %s34, 3
      %p220 = por %p218, %p219
      %p221 = scmp.ne.s32.totalorder %s212, %s213
      %p222 = scmp.eq.s32.totalorder %s34, 0
      %p223 = por %p221, %p222
      %p224 = scmp.ne.s32.totalorder %s212, %s213
      %p225 = scmp.eq.s32.totalorder %s35, 3
      %p226 = por %p224, %p225
      %p228 = scmp.ne.s32.totalorder %s213, %s227
      %p229 = scmp.eq.s32.totalorder %s35, 0
      %p230 = por %p228, %p229
      %s232 = sadd.s32 %s231, 1
      %p235 = scmp.eq.s32.totalorder %s29, 3
      %p236 = scmp.ne.s32.totalorder %s231, %s233
      %p237 = scmp.eq.s32.totalorder %s29, 0
      %p238 = por %p236, %p237
      %p239 = scmp.ne.s32.totalorder %s231, %s233
      %p240 = scmp.eq.s32.totalorder %s34, 3
      %p241 = por %p239, %p240
      %p242 = scmp.ne.s32.totalorder %s233, %s234
      %p243 = scmp.eq.s32.totalorder %s34, 0
      %p244 = por %p242, %p243
      %p245 = scmp.ne.s32.totalorder %s233, %s234
      %p246 = scmp.eq.s32.totalorder %s35, 3
      %p247 = por %p245, %p246
      %p249 = scmp.ne.s32.totalorder %s234, %s248
      %p250 = scmp.eq.s32.totalorder %s35, 0
      %p251 = por %p249, %p250
      %s253 = sadd.s32 %s252, 1
      %p256 = scmp.eq.s32.totalorder %s29, 3
      %p257 = scmp.ne.s32.totalorder %s252, %s254
      %p258 = scmp.eq.s32.totalorder %s29, 0
      %p259 = por %p257, %p258
      %p260 = scmp.ne.s32.totalorder %s252, %s254
      %p261 = scmp.eq.s32.totalorder %s34, 3
      %p262 = por %p260, %p261
      %p263 = scmp.ne.s32.totalorder %s254, %s255
      %p264 = scmp.eq.s32.totalorder %s34, 0
      %p265 = por %p263, %p264
      %p266 = scmp.ne.s32.totalorder %s254, %s255
      %p267 = scmp.eq.s32.totalorder %s35, 3
      %p268 = por %p266, %p267
      %p270 = scmp.ne.s32.totalorder %s255, %s269
      %p271 = scmp.eq.s32.totalorder %s35, 0
      %p272 = por %p270, %p271
      %s274 = sadd.s32 %s273, 1
      %p277 = scmp.eq.s32.totalorder %s29, 3
      %p278 = scmp.ne.s32.totalorder %s273, %s275
      %p279 = scmp.eq.s32.totalorder %s29, 0
      %p280 = por %p278, %p279
      %p281 = scmp.ne.s32.totalorder %s273, %s275
      %p282 = scmp.eq.s32.totalorder %s34, 3
      %p283 = por %p281, %p282
      %p284 = scmp.ne.s32.totalorder %s275, %s276
      %p285 = scmp.eq.s32.totalorder %s34, 0
      %p286 = por %p284, %p285
      %p287 = scmp.ne.s32.totalorder %s275, %s276
      %p288 = scmp.eq.s32.totalorder %s35, 3
      %p289 = por %p287, %p288
      %p291 = scmp.ne.s32.totalorder %s276, %s290
      %p292 = scmp.eq.s32.totalorder %s35, 0
      %p293 = por %p291, %p292
      %s295 = sadd.s32 %s294, 1
      %p298 = scmp.eq.s32.totalorder %s29, 3
      %p299 = scmp.ne.s32.totalorder %s294, %s296
      %p300 = scmp.eq.s32.totalorder %s29, 0
      %p301 = por %p299, %p300
      %p302 = scmp.ne.s32.totalorder %s294, %s296
      %p303 = scmp.eq.s32.totalorder %s34, 3
      %p304 = por %p302, %p303
      %p305 = scmp.ne.s32.totalorder %s296, %s297
      %p306 = scmp.eq.s32.totalorder %s34, 0
      %p307 = por %p305, %p306
      %p308 = scmp.ne.s32.totalorder %s296, %s297
      %p309 = scmp.eq.s32.totalorder %s35, 3
      %p310 = por %p308, %p309
      %p312 = scmp.ne.s32.totalorder %s297, %s311
      %p313 = scmp.eq.s32.totalorder %s35, 0
      %p314 = por %p312, %p313
      %s316 = sadd.s32 %s315, 1
      %p319 = scmp.eq.s32.totalorder %s29, 3
      %p320 = scmp.ne.s32.totalorder %s315, %s317
      %p321 = scmp.eq.s32.totalorder %s29, 0
      %p322 = por %p320, %p321
      %p323 = scmp.ne.s32.totalorder %s315, %s317
      %p324 = scmp.eq.s32.totalorder %s34, 3
      %p325 = por %p323, %p324
      %p326 = scmp.ne.s32.totalorder %s317, %s318
      %p327 = scmp.eq.s32.totalorder %s34, 0
      %p328 = por %p326, %p327
      %p329 = scmp.ne.s32.totalorder %s317, %s318
      %p330 = scmp.eq.s32.totalorder %s35, 3
      %p331 = por %p329, %p330
      %p333 = scmp.ne.s32.totalorder %s318, %s332
      %p334 = scmp.eq.s32.totalorder %s35, 0
      %p335 = por %p333, %p334
      %s336 = ssub.s32 %s29, %s36
      %p337 = scmp.eq.s32.totalorder %s336, 0
      %s339 = sadd.s32 %s338, 1
      %s340 = scalar_select %p337, %s338, %s339
      %p343 = pneg %p337
      %p344 = scmp.eq.s32.totalorder %s29, 3
      %p345 = por %p343, %p344
      %p346 = scmp.ne.s32.totalorder %s338, %s341
      %p347 = scmp.eq.s32.totalorder %s29, 0
      %p348 = por %p346, %p347
      %p349 = scmp.ne.s32.totalorder %s338, %s341
      %p350 = scmp.eq.s32.totalorder %s34, 3
      %p351 = por %p349, %p350
      %p352 = scmp.ne.s32.totalorder %s341, %s342
      %p353 = scmp.eq.s32.totalorder %s34, 0
      %p354 = por %p352, %p353
      %p355 = scmp.ne.s32.totalorder %s341, %s342
      %p356 = scmp.eq.s32.totalorder %s35, 3
      %p357 = por %p355, %p356
      %p359 = scmp.ne.s32.totalorder %s342, %s358
      %p360 = scmp.eq.s32.totalorder %s35, 0
      %p361 = por %p359, %p360
      %p362 = scmp.le.s32.totalorder 1, %s29
      %p363 = scmp.lt.s32.totalorder %s29, 5
      %p364 = pnand %p362, %p363
      %p365 = pneg %p364
      // Predicated region
      $region9: #{tpu_custom_call.1} parent=5 // pred_check
        _
      $region10: #{tpu_custom_call.1} parent=5 // pred_check_branch
        %367 = sbr.rel (%p364) target = $region12
      $region11: #{tpu_custom_call.1} parent=5 // pred_region
        %s368 = ssub.s32 %s29, 1
        // Predicated region
        $region13: #{tpu_custom_call.1} parent=11 // pred_check
          %p369 = pneg %p76
        $region14: #{tpu_custom_call.1} parent=11 // pred_check_branch
          %371 = sbr.rel (%p369) target = $region16
        $region15: #{tpu_custom_call.1} parent=11 // pred_region
          %s373 = ssub.s32 8192, 8192
          %374 = vsyncadd [#allocation6], %s373
          %s375 = sshll.u32 [#allocation5], 4
          %s376 = int_to_ptr.vmem [resolvable:$true] %s375
          %381 = dma.hbm_to_vmem [thread:$0]  %s1, 8192, %s376, [#allocation6], 256, 256, 16
        $region16: #{tpu_custom_call.1} parent=11 // pred_fallthru
          _
        // Predicated region
        $region17: #{tpu_custom_call.1} parent=11 // pred_check
          %p382 = pneg %p97
        $region18: #{tpu_custom_call.1} parent=11 // pred_check_branch
          %384 = sbr.rel (%p382) target = $region20
        $region19: #{tpu_custom_call.1} parent=11 // pred_region
          %s386 = ssub.s32 8192, 8192
          %387 = vsyncadd [#allocation6], %s386
          %s388 = sshll.u32 [#allocation7], 4
          %s389 = int_to_ptr.vmem [resolvable:$true] %s388
          %394 = dma.hbm_to_vmem [thread:$0]  %s2, 8192, %s389, [#allocation6], 256, 256, 16
        $region20: #{tpu_custom_call.1} parent=11 // pred_fallthru
          _
        // Predicated region
        $region21: #{tpu_custom_call.1} parent=11 // pred_check
          %p395 = pneg %p118
        $region22: #{tpu_custom_call.1} parent=11 // pred_check_branch
          %397 = sbr.rel (%p395) target = $region24
        $region23: #{tpu_custom_call.1} parent=11 // pred_region
          _
        $region24: #{tpu_custom_call.1} parent=11 // pred_fallthru
          _
        // Predicated region
        $region25: #{tpu_custom_call.1} parent=11 // pred_check
          %p398 = pneg %p139
        $region26: #{tpu_custom_call.1} parent=11 // pred_check_branch
          %400 = sbr.rel (%p398) target = $region28
        $region27: #{tpu_custom_call.1} parent=11 // pred_region
          %s402 = ssub.s32 8192, 8192
          %403 = vsyncadd [#allocation9], %s402
          %s404 = sshll.u32 [#allocation8], 4
          %s405 = int_to_ptr.vmem [resolvable:$true] %s404
          %410 = dma.hbm_to_vmem [thread:$0]  %s4, 8192, %s405, [#allocation9], 128, 128, 8
        $region28: #{tpu_custom_call.1} parent=11 // pred_fallthru
          _
        // Predicated region
        $region29: #{tpu_custom_call.1} parent=11 // pred_check
          %p411 = pneg %p160
        $region30: #{tpu_custom_call.1} parent=11 // pred_check_branch
          %413 = sbr.rel (%p411) target = $region32
        $region31: #{tpu_custom_call.1} parent=11 // pred_region
          _
        $region32: #{tpu_custom_call.1} parent=11 // pred_fallthru
          _
        // Predicated region
        $region33: #{tpu_custom_call.1} parent=11 // pred_check
          %p414 = pneg %p181
        $region34: #{tpu_custom_call.1} parent=11 // pred_check_branch
          %416 = sbr.rel (%p414) target = $region36
        $region35: #{tpu_custom_call.1} parent=11 // pred_region
          %s418 = ssub.s32 8192, 8192
          %419 = vsyncadd [#allocation9], %s418
          %s420 = sshll.u32 [#allocation10], 4
          %s421 = int_to_ptr.vmem [resolvable:$true] %s420
          %426 = dma.hbm_to_vmem [thread:$0]  %s6, 8192, %s421, [#allocation9], 256, 256, 16
        $region36: #{tpu_custom_call.1} parent=11 // pred_fallthru
          _
        // Predicated region
        $region37: #{tpu_custom_call.1} parent=11 // pred_check
          %p427 = pneg %p202
        $region38: #{tpu_custom_call.1} parent=11 // pred_check_branch
          %429 = sbr.rel (%p427) target = $region40
        $region39: #{tpu_custom_call.1} parent=11 // pred_region
          _
        $region40: #{tpu_custom_call.1} parent=11 // pred_fallthru
          _
        // Predicated region
        $region41: #{tpu_custom_call.1} parent=11 // pred_check
          %p430 = pneg %p223
        $region42: #{tpu_custom_call.1} parent=11 // pred_check_branch
          %432 = sbr.rel (%p430) target = $region44
        $region43: #{tpu_custom_call.1} parent=11 // pred_region
          %s434 = ssub.s32 8192, 8192
          %435 = vsyncadd [#allocation12], %s434
          %s436 = sshll.u32 [#allocation11], 4
          %s437 = int_to_ptr.vmem [resolvable:$true] %s436
          %442 = dma.hbm_to_vmem [thread:$0]  %s8, 8192, %s437, [#allocation12], 128, 128, 8
        $region44: #{tpu_custom_call.1} parent=11 // pred_fallthru
          _
        // Predicated region
        $region45: #{tpu_custom_call.1} parent=11 // pred_check
          %p443 = pneg %p244
        $region46: #{tpu_custom_call.1} parent=11 // pred_check_branch
          %445 = sbr.rel (%p443) target = $region48
        $region47: #{tpu_custom_call.1} parent=11 // pred_region
          _
        $region48: #{tpu_custom_call.1} parent=11 // pred_fallthru
          _
        // Predicated region
        $region49: #{tpu_custom_call.1} parent=11 // pred_check
          %p446 = pneg %p265
        $region50: #{tpu_custom_call.1} parent=11 // pred_check_branch
          %448 = sbr.rel (%p446) target = $region52
        $region51: #{tpu_custom_call.1} parent=11 // pred_region
          _
        $region52: #{tpu_custom_call.1} parent=11 // pred_fallthru
          _
        // Predicated region
        $region53: #{tpu_custom_call.1} parent=11 // pred_check
          %p449 = pneg %p286
        $region54: #{tpu_custom_call.1} parent=11 // pred_check_branch
          %451 = sbr.rel (%p449) target = $region56
        $region55: #{tpu_custom_call.1} parent=11 // pred_region
          _
        $region56: #{tpu_custom_call.1} parent=11 // pred_fallthru
          _
        // Predicated region
        $region57: #{tpu_custom_call.1} parent=11 // pred_check
          %p452 = pneg %p307
        $region58: #{tpu_custom_call.1} parent=11 // pred_check_branch
          %454 = sbr.rel (%p452) target = $region60
        $region59: #{tpu_custom_call.1} parent=11 // pred_region
          _
        $region60: #{tpu_custom_call.1} parent=11 // pred_fallthru
          _
        // Predicated region
        $region61: #{tpu_custom_call.1} parent=11 // pred_check
          %p455 = pneg %p328
        $region62: #{tpu_custom_call.1} parent=11 // pred_check_branch
          %457 = sbr.rel (%p455) target = $region64
        $region63: #{tpu_custom_call.1} parent=11 // pred_region
          _
        $region64: #{tpu_custom_call.1} parent=11 // pred_fallthru
          _
      $region12: #{tpu_custom_call.1} parent=5 // pred_fallthru
        _
      %p458 = scmp.lt.s32.totalorder %s29, 4
      // Predicated region
      $region65: #{tpu_custom_call.1} parent=5 // pred_check
        %p459 = pneg %p458
      $region66: #{tpu_custom_call.1} parent=5 // pred_check_branch
        %461 = sbr.rel (%p459) target = $region68
      $region67: #{tpu_custom_call.1} parent=5 // pred_region
        // Predicated region
        $region69: #{tpu_custom_call.1} parent=67 // pred_check
          %p462 = pneg %p49
        $region70: #{tpu_custom_call.1} parent=67 // pred_check_branch
          %464 = sbr.rel (%p462) target = $region72
        $region71: #{tpu_custom_call.1} parent=67 // pred_region
          %s465 = sand.u32 %s39, 1
          %s466 = scalar_lea.sflag [#allocation3], %s465
          %s467 = sand.u32 %s39, 1
          %s468 = smul.addr %s467, 16
          %s469 = scalar_lea.vmem [#allocation2], %s468
          %s471 = ssub.s32 256, 256
          %472 = vsyncadd %s466, %s471
          %s473 = smul.addr %s29, 2
          %s474 = smul.addr %s473, 128
          %s475 = scalar_lea.hbm %s0, %s474
          %s477 = sshll.u32 %s469, 4
          %s478 = int_to_ptr.vmem [resolvable:$true] %s477
          %480 = dma.hbm_to_vmem [thread:$0]  %s475, 256, %s478, %s466
        $region72: #{tpu_custom_call.1} parent=67 // pred_fallthru
          _
      $region68: #{tpu_custom_call.1} parent=5 // pred_fallthru
        _
      %p481 = scmp.le.s32.totalorder 1, %s29
      %p482 = scmp.lt.s32.totalorder %s29, 5
      %p483 = pnand %p481, %p482
      %p484 = pneg %p483
      // Predicated region
      $region73: #{tpu_custom_call.1} parent=5 // pred_check
        _
      $region74: #{tpu_custom_call.1} parent=5 // pred_check_branch
        %486 = sbr.rel (%p483) target = $region76
      $region75: #{tpu_custom_call.1} parent=5 // pred_region
        %s487 = ssub.s32 %s29, 1
        %s488 = sand.u32 %s42, 1
        %s489 = scalar_lea.sflag [#allocation3], %s488
        %s490 = sand.u32 %s42, 1
        %s491 = smul.addr %s490, 16
        %s492 = scalar_lea.vmem [#allocation2], %s491
        // Predicated region
        $region77: #{tpu_custom_call.1} parent=75 // pred_check
          %p493 = pneg %p55
        $region78: #{tpu_custom_call.1} parent=75 // pred_check_branch
          %495 = sbr.rel (%p493) target = $region80
        $region79: #{tpu_custom_call.1} parent=75 // pred_region
          %496 = dma.done %s489, 256
        $region80: #{tpu_custom_call.1} parent=75 // pred_fallthru
          _
        // Predicated region
        $region81: #{tpu_custom_call.1} parent=75 // pred_check
          %p497 = pneg %p76
        $region82: #{tpu_custom_call.1} parent=75 // pred_check_branch
          %499 = sbr.rel (%p497) target = $region84
        $region83: #{tpu_custom_call.1} parent=75 // pred_region
          %500 = dma.done [#allocation6], 8192
        $region84: #{tpu_custom_call.1} parent=75 // pred_fallthru
          _
        // Predicated region
        $region85: #{tpu_custom_call.1} parent=75 // pred_check
          %p501 = pneg %p97
        $region86: #{tpu_custom_call.1} parent=75 // pred_check_branch
          %503 = sbr.rel (%p501) target = $region88
        $region87: #{tpu_custom_call.1} parent=75 // pred_region
          %504 = dma.done [#allocation6], 8192
        $region88: #{tpu_custom_call.1} parent=75 // pred_fallthru
          _
        // Predicated region
        $region89: #{tpu_custom_call.1} parent=75 // pred_check
          %p505 = pneg %p139
        $region90: #{tpu_custom_call.1} parent=75 // pred_check_branch
          %507 = sbr.rel (%p505) target = $region92
        $region91: #{tpu_custom_call.1} parent=75 // pred_region
          %508 = dma.done [#allocation9], 8192
        $region92: #{tpu_custom_call.1} parent=75 // pred_fallthru
          _
        // Predicated region
        $region93: #{tpu_custom_call.1} parent=75 // pred_check
          %p509 = pneg %p181
        $region94: #{tpu_custom_call.1} parent=75 // pred_check_branch
          %511 = sbr.rel (%p509) target = $region96
        $region95: #{tpu_custom_call.1} parent=75 // pred_region
          %512 = dma.done [#allocation9], 8192
        $region96: #{tpu_custom_call.1} parent=75 // pred_fallthru
          _
        // Predicated region
        $region97: #{tpu_custom_call.1} parent=75 // pred_check
          %p513 = pneg %p223
        $region98: #{tpu_custom_call.1} parent=75 // pred_check_branch
          %515 = sbr.rel (%p513) target = $region100
        $region99: #{tpu_custom_call.1} parent=75 // pred_region
          %516 = dma.done [#allocation12], 8192
        $region100: #{tpu_custom_call.1} parent=75 // pred_fallthru
          _
        %s517 = sand.u32 %s42, 1
        %s518 = scalar_lea.sflag [#allocation3], %s517
        %s519 = sand.u32 %s42, 1
        %s520 = smul.addr %s519, 16
        %s521 = scalar_lea.vmem [#allocation2], %s520
        %p522 = pneg %p55
        %p523 = pneg %p52
        %p524 = pneg %p76
        %p525 = pneg %p73
        %p526 = pneg %p97
        %p527 = pneg %p94
        %p528 = pneg %p118
        %p529 = pneg %p115
        %p530 = pneg %p139
        %p531 = pneg %p136
        %p532 = pneg %p160
        %p533 = pneg %p157
        %p534 = pneg %p181
        %p535 = pneg %p178
        %p536 = pneg %p202
        %p537 = pneg %p199
        %p538 = pneg %p223
        %p539 = pneg %p220
        %p540 = pneg %p244
        %p541 = pneg %p241
        %p542 = pneg %p265
        %p543 = pneg %p262
        %p544 = pneg %p286
        %p545 = pneg %p283
        %p546 = pneg %p307
        %p547 = pneg %p304
        %p548 = pneg %p328
        %p549 = pneg %p325
        %p550 = pneg %p354
        %p551 = pneg %p351
        %s552 = sand.u32 %s341, 1
        %s553 = scalar_lea.sflag [#allocation4], %s552
        %s554 = sand.u32 %s341, 1
        %s555 = smul.addr %s554, 16
        %s556 = scalar_lea.vmem [#allocation13], %s555
        %v557 = vld [vmem:[%s492] sm:$0xff]
        %v558 = vld [vmem:[%s492 + $0x8] sm:$0xff]
        %v559 = vld [vmem:[#allocation5] sm:$0xff]
        %v560 = vld [vmem:[#allocation5 + $0x8] sm:$0xff]
        %v561 = vld [vmem:[#allocation5 + $0x10] sm:$0xff]
        %v562 = vld [vmem:[#allocation5 + $0x18] sm:$0xff]
        %v563 = vld [vmem:[#allocation5 + $0x20] sm:$0xff]
        %v564 = vld [vmem:[#allocation5 + $0x28] sm:$0xff]
        %v565 = vld [vmem:[#allocation5 + $0x30] sm:$0xff]
        %v566 = vld [vmem:[#allocation5 + $0x38] sm:$0xff]
        %v567 = vld [vmem:[#allocation5 + $0x40] sm:$0xff]
        %v568 = vld [vmem:[#allocation5 + $0x48] sm:$0xff]
        %v569 = vld [vmem:[#allocation5 + $0x50] sm:$0xff]
        %v570 = vld [vmem:[#allocation5 + $0x58] sm:$0xff]
        %v571 = vld [vmem:[#allocation5 + $0x60] sm:$0xff]
        %v572 = vld [vmem:[#allocation5 + $0x68] sm:$0xff]
        %v573 = vld [vmem:[#allocation5 + $0x70] sm:$0xff]
        %v574 = vld [vmem:[#allocation5 + $0x78] sm:$0xff]
        %v575 = vld [vmem:[#allocation5 + $0x80] sm:$0xff]
        %v576 = vld [vmem:[#allocation5 + $0x88] sm:$0xff]
        %v577 = vld [vmem:[#allocation5 + $0x90] sm:$0xff]
        %v578 = vld [vmem:[#allocation5 + $0x98] sm:$0xff]
        %v579 = vld [vmem:[#allocation5 + $0xa0] sm:$0xff]
        %v580 = vld [vmem:[#allocation5 + $0xa8] sm:$0xff]
        %v581 = vld [vmem:[#allocation5 + $0xb0] sm:$0xff]
        %v582 = vld [vmem:[#allocation5 + $0xb8] sm:$0xff]
        %v583 = vld [vmem:[#allocation5 + $0xc0] sm:$0xff]
        %v584 = vld [vmem:[#allocation5 + $0xc8] sm:$0xff]
        %v585 = vld [vmem:[#allocation5 + $0xd0] sm:$0xff]
        %v586 = vld [vmem:[#allocation5 + $0xd8] sm:$0xff]
        %v587 = vld [vmem:[#allocation5 + $0xe0] sm:$0xff]
        %v588 = vld [vmem:[#allocation5 + $0xe8] sm:$0xff]
        %v589 = vld [vmem:[#allocation5 + $0xf0] sm:$0xff]
        %v590 = vld [vmem:[#allocation5 + $0xf8] sm:$0xff]
        %v591 = vld [vmem:[#allocation5 + $0x100] sm:$0xff]
        %v592 = vld [vmem:[#allocation5 + $0x108] sm:$0xff]
        %v593 = vld [vmem:[#allocation5 + $0x110] sm:$0xff]
        %v594 = vld [vmem:[#allocation5 + $0x118] sm:$0xff]
        %v595 = vld [vmem:[#allocation5 + $0x120] sm:$0xff]
        %v596 = vld [vmem:[#allocation5 + $0x128] sm:$0xff]
        %v597 = vld [vmem:[#allocation5 + $0x130] sm:$0xff]
        %v598 = vld [vmem:[#allocation5 + $0x138] sm:$0xff]
        %v599 = vld [vmem:[#allocation5 + $0x140] sm:$0xff]
        %v600 = vld [vmem:[#allocation5 + $0x148] sm:$0xff]
        %v601 = vld [vmem:[#allocation5 + $0x150] sm:$0xff]
        %v602 = vld [vmem:[#allocation5 + $0x158] sm:$0xff]
        %v603 = vld [vmem:[#allocation5 + $0x160] sm:$0xff]
        %v604 = vld [vmem:[#allocation5 + $0x168] sm:$0xff]
        %v605 = vld [vmem:[#allocation5 + $0x170] sm:$0xff]
        %v606 = vld [vmem:[#allocation5 + $0x178] sm:$0xff]
        %v607 = vld [vmem:[#allocation5 + $0x180] sm:$0xff]
        %v608 = vld [vmem:[#allocation5 + $0x188] sm:$0xff]
        %v609 = vld [vmem:[#allocation5 + $0x190] sm:$0xff]
        %v610 = vld [vmem:[#allocation5 + $0x198] sm:$0xff]
        %v611 = vld [vmem:[#allocation5 + $0x1a0] sm:$0xff]
        %v612 = vld [vmem:[#allocation5 + $0x1a8] sm:$0xff]
        %v613 = vld [vmem:[#allocation5 + $0x1b0] sm:$0xff]
        %v614 = vld [vmem:[#allocation5 + $0x1b8] sm:$0xff]
        %v615 = vld [vmem:[#allocation5 + $0x1c0] sm:$0xff]
        %v616 = vld [vmem:[#allocation5 + $0x1c8] sm:$0xff]
        %v617 = vld [vmem:[#allocation5 + $0x1d0] sm:$0xff]
        %v618 = vld [vmem:[#allocation5 + $0x1d8] sm:$0xff]
        %v619 = vld [vmem:[#allocation5 + $0x1e0] sm:$0xff]
        %v620 = vld [vmem:[#allocation5 + $0x1e8] sm:$0xff]
        %v621 = vld [vmem:[#allocation5 + $0x1f0] sm:$0xff]
        %v622 = vld [vmem:[#allocation5 + $0x1f8] sm:$0xff]
        %v623 = vld [vmem:[%s10] sm:$0x3]
        %v624 = vld [vmem:[%s11] sm:$0x3]
        %625 = vmatprep.subr.mxu0 %v560
        %626 = vmatpush1.msra.mxu0 %v559
        %627 = vmatprep.subr.mxu0 %v562
        %628 = vmatpush1.msra.mxu0 %v561
        %629 = vmatprep.subr.mxu0 %v564
        %630 = vmatpush1.msra.mxu0 %v563
        %631 = vmatprep.subr.mxu0 %v566
        %632 = vmatpush1.msra.mxu0 %v565
        %633 = vmatprep.subr.mxu0 %v568
        %634 = vmatpush1.msra.mxu0 %v567
        %635 = vmatprep.subr.mxu0 %v570
        %636 = vmatpush1.msra.mxu0 %v569
        %637 = vmatprep.subr.mxu0 %v572
        %638 = vmatpush1.msra.mxu0 %v571
        %639 = vmatprep.subr.mxu0 %v574
        %640 = vmatpush1.msra.mxu0 %v573
        %641 = vmatprep.subr.mxu0 %v576
        %642 = vmatpush1.msra.mxu0 %v575
        %643 = vmatprep.subr.mxu0 %v578
        %644 = vmatpush1.msra.mxu0 %v577
        %645 = vmatprep.subr.mxu0 %v580
        %646 = vmatpush1.msra.mxu0 %v579
        %647 = vmatprep.subr.mxu0 %v582
        %648 = vmatpush1.msra.mxu0 %v581
        %649 = vmatprep.subr.mxu0 %v584
        %650 = vmatpush1.msra.mxu0 %v583
        %651 = vmatprep.subr.mxu0 %v586
        %652 = vmatpush1.msra.mxu0 %v585
        %653 = vmatprep.subr.mxu0 %v588
        %654 = vmatpush1.msra.mxu0 %v587
        %655 = vmatprep.subr.mxu0 %v590
        %656 = vmatpush1.msra.mxu0 %v589
        %657 = vmatprep.subr.mxu0 %v592
        %658 = vmatpush1.msra.mxu0 %v591
        %659 = vmatprep.subr.mxu0 %v594
        %660 = vmatpush1.msra.mxu0 %v593
        %661 = vmatprep.subr.mxu0 %v596
        %662 = vmatpush1.msra.mxu0 %v595
        %663 = vmatprep.subr.mxu0 %v598
        %664 = vmatpush1.msra.mxu0 %v597
        %665 = vmatprep.subr.mxu0 %v600
        %666 = vmatpush1.msra.mxu0 %v599
        %667 = vmatprep.subr.mxu0 %v602
        %668 = vmatpush1.msra.mxu0 %v601
        %669 = vmatprep.subr.mxu0 %v604
        %670 = vmatpush1.msra.mxu0 %v603
        %671 = vmatprep.subr.mxu0 %v606
        %672 = vmatpush1.msra.mxu0 %v605
        %673 = vmatprep.subr.mxu0 %v608
        %674 = vmatpush1.msra.mxu0 %v607
        %675 = vmatprep.subr.mxu0 %v610
        %676 = vmatpush1.msra.mxu0 %v609
        %677 = vmatprep.subr.mxu0 %v612
        %678 = vmatpush1.msra.mxu0 %v611
        %679 = vmatprep.subr.mxu0 %v614
        %680 = vmatpush1.msra.mxu0 %v613
        %681 = vmatprep.subr.mxu0 %v616
        %682 = vmatpush1.msra.mxu0 %v615
        %683 = vmatprep.subr.mxu0 %v618
        %684 = vmatpush1.msra.mxu0 %v617
        %685 = vmatprep.subr.mxu0 %v620
        %686 = vmatpush1.msra.mxu0 %v619
        %687 = vmatprep.subr.mxu0 %v622
        %688 = vmatpush1.msra.mxu0 %v621
        %689 = vmatprep.mubr.f32.mxu0 %v558
        %690 = vmatmul.mubr.f32.gmra.mrb[0].mxu0 %v557
        %v691 = vpop.f32.mrb[0].mxu0
        %v692 = vadd.f32 0.0, %v691
        %v693 = vpop.f32.mrb[0].mxu0
        %v694 = vadd.f32 0.0, %v693
        %695 = vdwg.mxu0
        %v696 = vmul.f32 %v557, %v557
        %v697 = vmul.f32 %v558, %v558
        %698 = vmatprep.subr.mxu0 %v560
        %699 = vmatpush1.msra.mxu0 %v559
        %700 = vmatprep.subr.mxu0 %v562
        %701 = vmatpush1.msra.mxu0 %v561
        %702 = vmatprep.subr.mxu0 %v564
        %703 = vmatpush1.msra.mxu0 %v563
        %704 = vmatprep.subr.mxu0 %v566
        %705 = vmatpush1.msra.mxu0 %v565
        %706 = vmatprep.subr.mxu0 %v568
        %707 = vmatpush1.msra.mxu0 %v567
        %708 = vmatprep.subr.mxu0 %v570
        %709 = vmatpush1.msra.mxu0 %v569
        %710 = vmatprep.subr.mxu0 %v572
        %711 = vmatpush1.msra.mxu0 %v571
        %712 = vmatprep.subr.mxu0 %v574
        %713 = vmatpush1.msra.mxu0 %v573
        %714 = vmatprep.subr.mxu0 %v576
        %715 = vmatpush1.msra.mxu0 %v575
        %716 = vmatprep.subr.mxu0 %v578
        %717 = vmatpush1.msra.mxu0 %v577
        %718 = vmatprep.subr.mxu0 %v580
        %719 = vmatpush1.msra.mxu0 %v579
        %720 = vmatprep.subr.mxu0 %v582
        %721 = vmatpush1.msra.mxu0 %v581
        %722 = vmatprep.subr.mxu0 %v584
        %723 = vmatpush1.msra.mxu0 %v583
        %724 = vmatprep.subr.mxu0 %v586
        %725 = vmatpush1.msra.mxu0 %v585
        %726 = vmatprep.subr.mxu0 %v588
        %727 = vmatpush1.msra.mxu0 %v587
        %728 = vmatprep.subr.mxu0 %v590
        %729 = vmatpush1.msra.mxu0 %v589
        %730 = vmatprep.subr.mxu0 %v592
        %731 = vmatpush1.msra.mxu0 %v591
        %732 = vmatprep.subr.mxu0 %v594
        %733 = vmatpush1.msra.mxu0 %v593
        %734 = vmatprep.subr.mxu0 %v596
        %735 = vmatpush1.msra.mxu0 %v595
        %736 = vmatprep.subr.mxu0 %v598
        %737 = vmatpush1.msra.mxu0 %v597
        %738 = vmatprep.subr.mxu0 %v600
        %739 = vmatpush1.msra.mxu0 %v599
        %740 = vmatprep.subr.mxu0 %v602
        %741 = vmatpush1.msra.mxu0 %v601
        %742 = vmatprep.subr.mxu0 %v604
        %743 = vmatpush1.msra.mxu0 %v603
        %744 = vmatprep.subr.mxu0 %v606
        %745 = vmatpush1.msra.mxu0 %v605
        %746 = vmatprep.subr.mxu0 %v608
        %747 = vmatpush1.msra.mxu0 %v607
        %748 = vmatprep.subr.mxu0 %v610
        %749 = vmatpush1.msra.mxu0 %v609
        %750 = vmatprep.subr.mxu0 %v612
        %751 = vmatpush1.msra.mxu0 %v611
        %752 = vmatprep.subr.mxu0 %v614
        %753 = vmatpush1.msra.mxu0 %v613
        %754 = vmatprep.subr.mxu0 %v616
        %755 = vmatpush1.msra.mxu0 %v615
        %756 = vmatprep.subr.mxu0 %v618
        %757 = vmatpush1.msra.mxu0 %v617
        %758 = vmatprep.subr.mxu0 %v620
        %759 = vmatpush1.msra.mxu0 %v619
        %760 = vmatprep.subr.mxu0 %v622
        %761 = vmatpush1.msra.mxu0 %v621
        %762 = vmatprep.mubr.f32.mxu0 %v697
        %763 = vmatmul.mubr.f32.gmra.mrb[0].mxu0 %v696
        %v764 = vpop.f32.mrb[0].mxu0
        %v765 = vadd.f32 0.0, %v764
        %v766 = vpop.f32.mrb[0].mxu0
        %v767 = vadd.f32 0.0, %v766
        %768 = vdwg.mxu0
        %v769 = vmul.f32 %v692, %v692
        %v770 = vmul.f32 %v694, %v694
        %v771 = vsub.f32 %v765, %v769
        %v772 = vsub.f32 %v767, %v770
        %v773 = vadd.f32 %v771, 1e-05
        %v774 = vadd.f32 %v772, 1e-05
        %v775 = vrsqrt.pop %v773
        %v776 = vrsqrt.pop %v774
        %v778 = vlaneseq
        %v779 = vshrl.u32 %v778, 7
        %v780 = vsub.s32 0, %v779
        %v781 = vrot.slane %v623, %v780
        %v782 = vlaneseq
        %v783 = vshrl.u32 %v782, 7
        %v784 = vsub.s32 1, %v783
        %v785 = vrot.slane %v623, %v784
        %v788 = vmul.f32 %v781, %v775
        %v789 = vmul.f32 %v785, %v776
        %v790 = vmul.f32 %v557, %v788
        %v791 = vmul.f32 %v558, %v789
        %v792 = vmul.f32 %v692, %v788
        %v793 = vmul.f32 %v694, %v789
        %v795 = vlaneseq
        %v796 = vshrl.u32 %v795, 7
        %v797 = vsub.s32 0, %v796
        %v798 = vrot.slane %v624, %v797
        %v799 = vlaneseq
        %v800 = vshrl.u32 %v799, 7
        %v801 = vsub.s32 1, %v800
        %v802 = vrot.slane %v624, %v801
        %v805 = vsub.f32 %v798, %v792
        %v806 = vsub.f32 %v802, %v793
        %v807 = vadd.f32 %v790, %v805
        %v808 = vadd.f32 %v791, %v806
        %v809 = vpack.c.bf16 %v807, %v807
        %v810 = vpack.c.bf16 %v808, %v808
        %v811 = vld [vmem:[#allocation7] sm:$0xff]
        %v812 = vld [vmem:[#allocation7 + $0x8] sm:$0xff]
        %v813 = vld [vmem:[#allocation7 + $0x10] sm:$0xff]
        %v814 = vld [vmem:[#allocation7 + $0x18] sm:$0xff]
        %v815 = vld [vmem:[#allocation7 + $0x20] sm:$0xff]
        %v816 = vld [vmem:[#allocation7 + $0x28] sm:$0xff]
        %v817 = vld [vmem:[#allocation7 + $0x30] sm:$0xff]
        %v818 = vld [vmem:[#allocation7 + $0x38] sm:$0xff]
        %v819 = vld [vmem:[#allocation7 + $0x40] sm:$0xff]
        %v820 = vld [vmem:[#allocation7 + $0x48] sm:$0xff]
        %v821 = vld [vmem:[#allocation7 + $0x50] sm:$0xff]
        %v822 = vld [vmem:[#allocation7 + $0x58] sm:$0xff]
        %v823 = vld [vmem:[#allocation7 + $0x60] sm:$0xff]
        %v824 = vld [vmem:[#allocation7 + $0x68] sm:$0xff]
        %v825 = vld [vmem:[#allocation7 + $0x70] sm:$0xff]
        %v826 = vld [vmem:[#allocation7 + $0x78] sm:$0xff]
        %v827 = vld [vmem:[#allocation7 + $0x80] sm:$0xff]
        %v828 = vld [vmem:[#allocation7 + $0x88] sm:$0xff]
        %v829 = vld [vmem:[#allocation7 + $0x90] sm:$0xff]
        %v830 = vld [vmem:[#allocation7 + $0x98] sm:$0xff]
        %v831 = vld [vmem:[#allocation7 + $0xa0] sm:$0xff]
        %v832 = vld [vmem:[#allocation7 + $0xa8] sm:$0xff]
        %v833 = vld [vmem:[#allocation7 + $0xb0] sm:$0xff]
        %v834 = vld [vmem:[#allocation7 + $0xb8] sm:$0xff]
        %v835 = vld [vmem:[#allocation7 + $0xc0] sm:$0xff]
        %v836 = vld [vmem:[#allocation7 + $0xc8] sm:$0xff]
        %v837 = vld [vmem:[#allocation7 + $0xd0] sm:$0xff]
        %v838 = vld [vmem:[#allocation7 + $0xd8] sm:$0xff]
        %v839 = vld [vmem:[#allocation7 + $0xe0] sm:$0xff]
        %v840 = vld [vmem:[#allocation7 + $0xe8] sm:$0xff]
        %v841 = vld [vmem:[#allocation7 + $0xf0] sm:$0xff]
        %v842 = vld [vmem:[#allocation7 + $0xf8] sm:$0xff]
        %v843 = vld [vmem:[#allocation7 + $0x100] sm:$0xff]
        %v844 = vld [vmem:[#allocation7 + $0x108] sm:$0xff]
        %v845 = vld [vmem:[#allocation7 + $0x110] sm:$0xff]
        %v846 = vld [vmem:[#allocation7 + $0x118] sm:$0xff]
        %v847 = vld [vmem:[#allocation7 + $0x120] sm:$0xff]
        %v848 = vld [vmem:[#allocation7 + $0x128] sm:$0xff]
        %v849 = vld [vmem:[#allocation7 + $0x130] sm:$0xff]
        %v850 = vld [vmem:[#allocation7 + $0x138] sm:$0xff]
        %v851 = vld [vmem:[#allocation7 + $0x140] sm:$0xff]
        %v852 = vld [vmem:[#allocation7 + $0x148] sm:$0xff]
        %v853 = vld [vmem:[#allocation7 + $0x150] sm:$0xff]
        %v854 = vld [vmem:[#allocation7 + $0x158] sm:$0xff]
        %v855 = vld [vmem:[#allocation7 + $0x160] sm:$0xff]
        %v856 = vld [vmem:[#allocation7 + $0x168] sm:$0xff]
        %v857 = vld [vmem:[#allocation7 + $0x170] sm:$0xff]
        %v858 = vld [vmem:[#allocation7 + $0x178] sm:$0xff]
        %v859 = vld [vmem:[#allocation7 + $0x180] sm:$0xff]
        %v860 = vld [vmem:[#allocation7 + $0x188] sm:$0xff]
        %v861 = vld [vmem:[#allocation7 + $0x190] sm:$0xff]
        %v862 = vld [vmem:[#allocation7 + $0x198] sm:$0xff]
        %v863 = vld [vmem:[#allocation7 + $0x1a0] sm:$0xff]
        %v864 = vld [vmem:[#allocation7 + $0x1a8] sm:$0xff]
        %v865 = vld [vmem:[#allocation7 + $0x1b0] sm:$0xff]
        %v866 = vld [vmem:[#allocation7 + $0x1b8] sm:$0xff]
        %v867 = vld [vmem:[#allocation7 + $0x1c0] sm:$0xff]
        %v868 = vld [vmem:[#allocation7 + $0x1c8] sm:$0xff]
        %v869 = vld [vmem:[#allocation7 + $0x1d0] sm:$0xff]
        %v870 = vld [vmem:[#allocation7 + $0x1d8] sm:$0xff]
        %v871 = vld [vmem:[#allocation7 + $0x1e0] sm:$0xff]
        %v872 = vld [vmem:[#allocation7 + $0x1e8] sm:$0xff]
        %v873 = vld [vmem:[#allocation7 + $0x1f0] sm:$0xff]
        %v874 = vld [vmem:[#allocation7 + $0x1f8] sm:$0xff]
        %v875 = vld [vmem:[%s3] sm:$0xf]
        %v877 = vlaneseq
        %v878 = vshrl.u32 %v877, 7
        %v879 = vsub.s32 0, %v878
        %v880 = vrot.slane %v875, %v879
        %v881 = vlaneseq
        %v882 = vshrl.u32 %v881, 7
        %v883 = vsub.s32 1, %v882
        %v884 = vrot.slane %v875, %v883
        %v885 = vlaneseq
        %v886 = vshrl.u32 %v885, 7
        %v887 = vsub.s32 2, %v886
        %v888 = vrot.slane %v875, %v887
        %v889 = vlaneseq
        %v890 = vshrl.u32 %v889, 7
        %v891 = vsub.s32 3, %v890
        %v892 = vrot.slane %v875, %v891
        %v961 = vunpack.c.l.b16 %v811
        %v962 = vunpack.c.h.b16 %v811
        %v963 = vunpack.c.l.b16 %v812
        %v964 = vunpack.c.h.b16 %v812
        %v965 = vunpack.c.l.b16 %v813
        %v966 = vunpack.c.h.b16 %v813
        %v967 = vunpack.c.l.b16 %v814
        %v968 = vunpack.c.h.b16 %v814
        %v969 = vunpack.c.l.b16 %v815
        %v970 = vunpack.c.h.b16 %v815
        %v971 = vunpack.c.l.b16 %v816
        %v972 = vunpack.c.h.b16 %v816
        %v973 = vunpack.c.l.b16 %v817
        %v974 = vunpack.c.h.b16 %v817
        %v975 = vunpack.c.l.b16 %v818
        %v976 = vunpack.c.h.b16 %v818
        %v977 = vunpack.c.l.b16 %v819
        %v978 = vunpack.c.h.b16 %v819
        %v979 = vunpack.c.l.b16 %v820
        %v980 = vunpack.c.h.b16 %v820
        %v981 = vunpack.c.l.b16 %v821
        %v982 = vunpack.c.h.b16 %v821
        %v983 = vunpack.c.l.b16 %v822
        %v984 = vunpack.c.h.b16 %v822
        %v985 = vunpack.c.l.b16 %v823
        %v986 = vunpack.c.h.b16 %v823
        %v987 = vunpack.c.l.b16 %v824
        %v988 = vunpack.c.h.b16 %v824
        %v989 = vunpack.c.l.b16 %v825
        %v990 = vunpack.c.h.b16 %v825
        %v991 = vunpack.c.l.b16 %v826
        %v992 = vunpack.c.h.b16 %v826
        %v993 = vunpack.c.l.b16 %v827
        %v994 = vunpack.c.h.b16 %v827
        %v995 = vunpack.c.l.b16 %v828
        %v996 = vunpack.c.h.b16 %v828
        %v997 = vunpack.c.l.b16 %v829
        %v998 = vunpack.c.h.b16 %v829
        %v999 = vunpack.c.l.b16 %v830
        %v1000 = vunpack.c.h.b16 %v830
        %v1001 = vunpack.c.l.b16 %v831
        %v1002 = vunpack.c.h.b16 %v831
        %v1003 = vunpack.c.l.b16 %v832
        %v1004 = vunpack.c.h.b16 %v832
        %v1005 = vunpack.c.l.b16 %v833
        %v1006 = vunpack.c.h.b16 %v833
        %v1007 = vunpack.c.l.b16 %v834
        %v1008 = vunpack.c.h.b16 %v834
        %v1009 = vunpack.c.l.b16 %v835
        %v1010 = vunpack.c.h.b16 %v835
        %v1011 = vunpack.c.l.b16 %v836
        %v1012 = vunpack.c.h.b16 %v836
        %v1013 = vunpack.c.l.b16 %v837
        %v1014 = vunpack.c.h.b16 %v837
        %v1015 = vunpack.c.l.b16 %v838
        %v1016 = vunpack.c.h.b16 %v838
        %v1017 = vunpack.c.l.b16 %v839
        %v1018 = vunpack.c.h.b16 %v839
        %v1019 = vunpack.c.l.b16 %v840
        %v1020 = vunpack.c.h.b16 %v840
        %v1021 = vunpack.c.l.b16 %v841
        %v1022 = vunpack.c.h.b16 %v841
        %v1023 = vunpack.c.l.b16 %v842
        %v1024 = vunpack.c.h.b16 %v842
        %v1025 = vunpack.c.l.b16 %v843
        %v1026 = vunpack.c.h.b16 %v843
        %v1027 = vunpack.c.l.b16 %v844
        %v1028 = vunpack.c.h.b16 %v844
        %v1029 = vunpack.c.l.b16 %v845
        %v1030 = vunpack.c.h.b16 %v845
        %v1031 = vunpack.c.l.b16 %v846
        %v1032 = vunpack.c.h.b16 %v846
        %v1033 = vunpack.c.l.b16 %v847
        %v1034 = vunpack.c.h.b16 %v847
        %v1035 = vunpack.c.l.b16 %v848
        %v1036 = vunpack.c.h.b16 %v848
        %v1037 = vunpack.c.l.b16 %v849
        %v1038 = vunpack.c.h.b16 %v849
        %v1039 = vunpack.c.l.b16 %v850
        %v1040 = vunpack.c.h.b16 %v850
        %v1041 = vunpack.c.l.b16 %v851
        %v1042 = vunpack.c.h.b16 %v851
        %v1043 = vunpack.c.l.b16 %v852
        %v1044 = vunpack.c.h.b16 %v852
        %v1045 = vunpack.c.l.b16 %v853
        %v1046 = vunpack.c.h.b16 %v853
        %v1047 = vunpack.c.l.b16 %v854
        %v1048 = vunpack.c.h.b16 %v854
        %v1049 = vunpack.c.l.b16 %v855
        %v1050 = vunpack.c.h.b16 %v855
        %v1051 = vunpack.c.l.b16 %v856
        %v1052 = vunpack.c.h.b16 %v856
        %v1053 = vunpack.c.l.b16 %v857
        %v1054 = vunpack.c.h.b16 %v857
        %v1055 = vunpack.c.l.b16 %v858
        %v1056 = vunpack.c.h.b16 %v858
        %v1057 = vunpack.c.l.b16 %v859
        %v1058 = vunpack.c.h.b16 %v859
        %v1059 = vunpack.c.l.b16 %v860
        %v1060 = vunpack.c.h.b16 %v860
        %v1061 = vunpack.c.l.b16 %v861
        %v1062 = vunpack.c.h.b16 %v861
        %v1063 = vunpack.c.l.b16 %v862
        %v1064 = vunpack.c.h.b16 %v862
        %v1065 = vunpack.c.l.b16 %v863
        %v1066 = vunpack.c.h.b16 %v863
        %v1067 = vunpack.c.l.b16 %v864
        %v1068 = vunpack.c.h.b16 %v864
        %v1069 = vunpack.c.l.b16 %v865
        %v1070 = vunpack.c.h.b16 %v865
        %v1071 = vunpack.c.l.b16 %v866
        %v1072 = vunpack.c.h.b16 %v866
        %v1073 = vunpack.c.l.b16 %v867
        %v1074 = vunpack.c.h.b16 %v867
        %v1075 = vunpack.c.l.b16 %v868
        %v1076 = vunpack.c.h.b16 %v868
        %v1077 = vunpack.c.l.b16 %v869
        %v1078 = vunpack.c.h.b16 %v869
        %v1079 = vunpack.c.l.b16 %v870
        %v1080 = vunpack.c.h.b16 %v870
        %v1081 = vunpack.c.l.b16 %v871
        %v1082 = vunpack.c.h.b16 %v871
        %v1083 = vunpack.c.l.b16 %v872
        %v1084 = vunpack.c.h.b16 %v872
        %v1085 = vunpack.c.l.b16 %v873
        %v1086 = vunpack.c.h.b16 %v873
        %v1087 = vunpack.c.l.b16 %v874
        %v1088 = vunpack.c.h.b16 %v874
        %v1089 = vpack.c.b16 %v965, %v961
        %v1090 = vpack.c.b16 %v966, %v962
        %v1091 = vpack.c.b16 %v967, %v963
        %v1092 = vpack.c.b16 %v968, %v964
        %v1093 = vpack.c.b16 %v973, %v969
        %v1094 = vpack.c.b16 %v974, %v970
        %v1095 = vpack.c.b16 %v975, %v971
        %v1096 = vpack.c.b16 %v976, %v972
        %v1097 = vpack.c.b16 %v981, %v977
        %v1098 = vpack.c.b16 %v982, %v978
        %v1099 = vpack.c.b16 %v983, %v979
        %v1100 = vpack.c.b16 %v984, %v980
        %v1101 = vpack.c.b16 %v989, %v985
        %v1102 = vpack.c.b16 %v990, %v986
        %v1103 = vpack.c.b16 %v991, %v987
        %v1104 = vpack.c.b16 %v992, %v988
        %v1105 = vpack.c.b16 %v997, %v993
        %v1106 = vpack.c.b16 %v998, %v994
        %v1107 = vpack.c.b16 %v999, %v995
        %v1108 = vpack.c.b16 %v1000, %v996
        %v1109 = vpack.c.b16 %v1005, %v1001
        %v1110 = vpack.c.b16 %v1006, %v1002
        %v1111 = vpack.c.b16 %v1007, %v1003
        %v1112 = vpack.c.b16 %v1008, %v1004
        %v1113 = vpack.c.b16 %v1013, %v1009
        %v1114 = vpack.c.b16 %v1014, %v1010
        %v1115 = vpack.c.b16 %v1015, %v1011
        %v1116 = vpack.c.b16 %v1016, %v1012
        %v1117 = vpack.c.b16 %v1021, %v1017
        %v1118 = vpack.c.b16 %v1022, %v1018
        %v1119 = vpack.c.b16 %v1023, %v1019
        %v1120 = vpack.c.b16 %v1024, %v1020
        %v1121 = vpack.c.b16 %v1029, %v1025
        %v1122 = vpack.c.b16 %v1030, %v1026
        %v1123 = vpack.c.b16 %v1031, %v1027
        %v1124 = vpack.c.b16 %v1032, %v1028
        %v1125 = vpack.c.b16 %v1037, %v1033
        %v1126 = vpack.c.b16 %v1038, %v1034
        %v1127 = vpack.c.b16 %v1039, %v1035
        %v1128 = vpack.c.b16 %v1040, %v1036
        %v1129 = vpack.c.b16 %v1045, %v1041
        %v1130 = vpack.c.b16 %v1046, %v1042
        %v1131 = vpack.c.b16 %v1047, %v1043
        %v1132 = vpack.c.b16 %v1048, %v1044
        %v1133 = vpack.c.b16 %v1053, %v1049
        %v1134 = vpack.c.b16 %v1054, %v1050
        %v1135 = vpack.c.b16 %v1055, %v1051
        %v1136 = vpack.c.b16 %v1056, %v1052
        %v1137 = vpack.c.b16 %v1061, %v1057
        %v1138 = vpack.c.b16 %v1062, %v1058
        %v1139 = vpack.c.b16 %v1063, %v1059
        %v1140 = vpack.c.b16 %v1064, %v1060
        %v1141 = vpack.c.b16 %v1069, %v1065
        %v1142 = vpack.c.b16 %v1070, %v1066
        %v1143 = vpack.c.b16 %v1071, %v1067
        %v1144 = vpack.c.b16 %v1072, %v1068
        %v1145 = vpack.c.b16 %v1077, %v1073
        %v1146 = vpack.c.b16 %v1078, %v1074
        %v1147 = vpack.c.b16 %v1079, %v1075
        %v1148 = vpack.c.b16 %v1080, %v1076
        %v1149 = vpack.c.b16 %v1085, %v1081
        %v1150 = vpack.c.b16 %v1086, %v1082
        %v1151 = vpack.c.b16 %v1087, %v1083
        %v1152 = vpack.c.b16 %v1088, %v1084
        %1217 = vmatprep.subr.bf16.mxu0 %v1090
        %1218 = vmatpush1.bf16.msra.mxu0 %v1089
        %1219 = vmatprep.subr.bf16.mxu0 %v1094
        %1220 = vmatpush1.bf16.msra.mxu0 %v1093
        %1221 = vmatprep.subr.bf16.mxu0 %v1098
        %1222 = vmatpush1.bf16.msra.mxu0 %v1097
        %1223 = vmatprep.subr.bf16.mxu0 %v1102
        %1224 = vmatpush1.bf16.msra.mxu0 %v1101
        %1225 = vmatprep.subr.bf16.mxu0 %v1106
        %1226 = vmatpush1.bf16.msra.mxu0 %v1105
        %1227 = vmatprep.subr.bf16.mxu0 %v1110
        %1228 = vmatpush1.bf16.msra.mxu0 %v1109
        %1229 = vmatprep.subr.bf16.mxu0 %v1114
        %1230 = vmatpush1.bf16.msra.mxu0 %v1113
        %1231 = vmatprep.subr.bf16.mxu0 %v1118
        %1232 = vmatpush1.bf16.msra.mxu0 %v1117
        %1233 = vmatprep.subr.bf16.mxu0 %v1122
        %1234 = vmatpush1.bf16.msra.mxu0 %v1121
        %1235 = vmatprep.subr.bf16.mxu0 %v1126
        %1236 = vmatpush1.bf16.msra.mxu0 %v1125
        %1237 = vmatprep.subr.bf16.mxu0 %v1130
        %1238 = vmatpush1.bf16.msra.mxu0 %v1129
        %1239 = vmatprep.subr.bf16.mxu0 %v1134
        %1240 = vmatpush1.bf16.msra.mxu0 %v1133
        %1241 = vmatprep.subr.bf16.mxu0 %v1138
        %1242 = vmatpush1.bf16.msra.mxu0 %v1137
        %1243 = vmatprep.subr.bf16.mxu0 %v1142
        %1244 = vmatpush1.bf16.msra.mxu0 %v1141
        %1245 = vmatprep.subr.bf16.mxu0 %v1146
        %1246 = vmatpush1.bf16.msra.mxu0 %v1145
        %1247 = vmatprep.subr.bf16.mxu0 %v1150
        %1248 = vmatpush1.bf16.msra.mxu0 %v1149
        %1249 = vmatprep.mubr.bf16.mxu0 %v810
        %1250 = vmatmul.mubr.bf16.gmra.mrb[0].mxu0 %v809
        %v1251 = vpop.f32.mrb[0].mxu0
        %v1252 = vadd.f32 %v880, %v1251
        %v1253 = vpop.f32.mrb[0].mxu0
        %v1254 = vadd.f32 %v884, %v1253
        %v1255 = vpop.f32.mrb[0].mxu0
        %v1256 = vpop.f32.mrb[0].mxu0
        %1257 = vdwg.mxu0
        %1258 = vmatprep.subr.bf16.mxu0 %v1092
        %1259 = vmatpush1.bf16.msra.mxu0 %v1091
        %1260 = vmatprep.subr.bf16.mxu0 %v1096
        %1261 = vmatpush1.bf16.msra.mxu0 %v1095
        %1262 = vmatprep.subr.bf16.mxu0 %v1100
        %1263 = vmatpush1.bf16.msra.mxu0 %v1099
        %1264 = vmatprep.subr.bf16.mxu0 %v1104
        %1265 = vmatpush1.bf16.msra.mxu0 %v1103
        %1266 = vmatprep.subr.bf16.mxu0 %v1108
        %1267 = vmatpush1.bf16.msra.mxu0 %v1107
        %1268 = vmatprep.subr.bf16.mxu0 %v1112
        %1269 = vmatpush1.bf16.msra.mxu0 %v1111
        %1270 = vmatprep.subr.bf16.mxu0 %v1116
        %1271 = vmatpush1.bf16.msra.mxu0 %v1115
        %1272 = vmatprep.subr.bf16.mxu0 %v1120
        %1273 = vmatpush1.bf16.msra.mxu0 %v1119
        %1274 = vmatprep.subr.bf16.mxu0 %v1124
        %1275 = vmatpush1.bf16.msra.mxu0 %v1123
        %1276 = vmatprep.subr.bf16.mxu0 %v1128
        %1277 = vmatpush1.bf16.msra.mxu0 %v1127
        %1278 = vmatprep.subr.bf16.mxu0 %v1132
        %1279 = vmatpush1.bf16.msra.mxu0 %v1131
        %1280 = vmatprep.subr.bf16.mxu0 %v1136
        %1281 = vmatpush1.bf16.msra.mxu0 %v1135
        %1282 = vmatprep.subr.bf16.mxu0 %v1140
        %1283 = vmatpush1.bf16.msra.mxu0 %v1139
        %1284 = vmatprep.subr.bf16.mxu0 %v1144
        %1285 = vmatpush1.bf16.msra.mxu0 %v1143
        %1286 = vmatprep.subr.bf16.mxu0 %v1148
        %1287 = vmatpush1.bf16.msra.mxu0 %v1147
        %1288 = vmatprep.subr.bf16.mxu0 %v1152
        %1289 = vmatpush1.bf16.msra.mxu0 %v1151
        %1290 = vmatprep.mubr.bf16.mxu0 %v810
        %1291 = vmatmul.mubr.bf16.gmra.mrb[0].mxu0 %v809
        %v1292 = vpop.f32.mrb[0].mxu0
        %v1293 = vadd.f32 %v888, %v1292
        %v1294 = vpop.f32.mrb[0].mxu0
        %v1295 = vadd.f32 %v892, %v1294
        %v1296 = vpop.f32.mrb[0].mxu0
        %v1297 = vpop.f32.mrb[0].mxu0
        %1298 = vdwg.mxu0
        %v1299 = vmul.f32 %v1252, 0.5
        %v1300 = vmul.f32 %v1254, 0.5
        %v1301 = vmul.f32 %v1293, 0.5
        %v1302 = vmul.f32 %v1295, 0.5
        %v1303 = vmul.f32 %v1252, 0.044715
        %v1304 = vmul.f32 %v1254, 0.044715
        %v1305 = vmul.f32 %v1293, 0.044715
        %v1306 = vmul.f32 %v1295, 0.044715
        %v1307 = vmul.f32 %v1303, %v1252
        %v1308 = vmul.f32 %v1304, %v1254
        %v1309 = vmul.f32 %v1305, %v1293
        %v1310 = vmul.f32 %v1306, %v1295
        %v1311 = vmul.f32 %v1307, %v1252
        %v1312 = vmul.f32 %v1308, %v1254
        %v1313 = vmul.f32 %v1309, %v1293
        %v1314 = vmul.f32 %v1310, %v1295
        %v1315 = vadd.f32 %v1252, %v1311
        %v1316 = vadd.f32 %v1254, %v1312
        %v1317 = vadd.f32 %v1293, %v1313
        %v1318 = vadd.f32 %v1295, %v1314
        %v1319 = vmul.f32 %v1315, 0.7978846
        %v1320 = vmul.f32 %v1316, 0.7978846
        %v1321 = vmul.f32 %v1317, 0.7978846
        %v1322 = vmul.f32 %v1318, 0.7978846
        %v1323 = vtanh.pop %v1319
        %v1324 = vtanh.pop %v1320
        %v1325 = vtanh.pop %v1321
        %v1326 = vtanh.pop %v1322
        %v1327 = vadd.f32 %v1323, 1.0
        %v1328 = vadd.f32 %v1324, 1.0
        %v1329 = vadd.f32 %v1325, 1.0
        %v1330 = vadd.f32 %v1326, 1.0
        %v1331 = vmul.f32 %v1299, %v1327
        %v1332 = vmul.f32 %v1300, %v1328
        %v1333 = vmul.f32 %v1301, %v1329
        %v1334 = vmul.f32 %v1302, %v1330
        %v1335 = vpack.c.bf16 %v1331, %v1331
        %v1336 = vpack.c.bf16 %v1332, %v1332
        %v1337 = vpack.c.bf16 %v1333, %v1333
        %v1338 = vpack.c.bf16 %v1334, %v1334
        %v1339 = vld [vmem:[#allocation8] sm:$0xff]
        %v1340 = vld [vmem:[#allocation8 + $0x8] sm:$0xff]
        %v1341 = vld [vmem:[#allocation8 + $0x10] sm:$0xff]
        %v1342 = vld [vmem:[#allocation8 + $0x18] sm:$0xff]
        %v1343 = vld [vmem:[#allocation8 + $0x20] sm:$0xff]
        %v1344 = vld [vmem:[#allocation8 + $0x28] sm:$0xff]
        %v1345 = vld [vmem:[#allocation8 + $0x30] sm:$0xff]
        %v1346 = vld [vmem:[#allocation8 + $0x38] sm:$0xff]
        %v1347 = vld [vmem:[#allocation8 + $0x40] sm:$0xff]
        %v1348 = vld [vmem:[#allocation8 + $0x48] sm:$0xff]
        %v1349 = vld [vmem:[#allocation8 + $0x50] sm:$0xff]
        %v1350 = vld [vmem:[#allocation8 + $0x58] sm:$0xff]
        %v1351 = vld [vmem:[#allocation8 + $0x60] sm:$0xff]
        %v1352 = vld [vmem:[#allocation8 + $0x68] sm:$0xff]
        %v1353 = vld [vmem:[#allocation8 + $0x70] sm:$0xff]
        %v1354 = vld [vmem:[#allocation8 + $0x78] sm:$0xff]
        %v1355 = vld [vmem:[#allocation8 + $0x80] sm:$0xff]
        %v1356 = vld [vmem:[#allocation8 + $0x88] sm:$0xff]
        %v1357 = vld [vmem:[#allocation8 + $0x90] sm:$0xff]
        %v1358 = vld [vmem:[#allocation8 + $0x98] sm:$0xff]
        %v1359 = vld [vmem:[#allocation8 + $0xa0] sm:$0xff]
        %v1360 = vld [vmem:[#allocation8 + $0xa8] sm:$0xff]
        %v1361 = vld [vmem:[#allocation8 + $0xb0] sm:$0xff]
        %v1362 = vld [vmem:[#allocation8 + $0xb8] sm:$0xff]
        %v1363 = vld [vmem:[#allocation8 + $0xc0] sm:$0xff]
        %v1364 = vld [vmem:[#allocation8 + $0xc8] sm:$0xff]
        %v1365 = vld [vmem:[#allocation8 + $0xd0] sm:$0xff]
        %v1366 = vld [vmem:[#allocation8 + $0xd8] sm:$0xff]
        %v1367 = vld [vmem:[#allocation8 + $0xe0] sm:$0xff]
        %v1368 = vld [vmem:[#allocation8 + $0xe8] sm:$0xff]
        %v1369 = vld [vmem:[#allocation8 + $0xf0] sm:$0xff]
        %v1370 = vld [vmem:[#allocation8 + $0xf8] sm:$0xff]
        %v1371 = vld [vmem:[#allocation8 + $0x100] sm:$0xff]
        %v1372 = vld [vmem:[#allocation8 + $0x108] sm:$0xff]
        %v1373 = vld [vmem:[#allocation8 + $0x110] sm:$0xff]
        %v1374 = vld [vmem:[#allocation8 + $0x118] sm:$0xff]
        %v1375 = vld [vmem:[#allocation8 + $0x120] sm:$0xff]
        %v1376 = vld [vmem:[#allocation8 + $0x128] sm:$0xff]
        %v1377 = vld [vmem:[#allocation8 + $0x130] sm:$0xff]
        %v1378 = vld [vmem:[#allocation8 + $0x138] sm:$0xff]
        %v1379 = vld [vmem:[#allocation8 + $0x140] sm:$0xff]
        %v1380 = vld [vmem:[#allocation8 + $0x148] sm:$0xff]
        %v1381 = vld [vmem:[#allocation8 + $0x150] sm:$0xff]
        %v1382 = vld [vmem:[#allocation8 + $0x158] sm:$0xff]
        %v1383 = vld [vmem:[#allocation8 + $0x160] sm:$0xff]
        %v1384 = vld [vmem:[#allocation8 + $0x168] sm:$0xff]
        %v1385 = vld [vmem:[#allocation8 + $0x170] sm:$0xff]
        %v1386 = vld [vmem:[#allocation8 + $0x178] sm:$0xff]
        %v1387 = vld [vmem:[#allocation8 + $0x180] sm:$0xff]
        %v1388 = vld [vmem:[#allocation8 + $0x188] sm:$0xff]
        %v1389 = vld [vmem:[#allocation8 + $0x190] sm:$0xff]
        %v1390 = vld [vmem:[#allocation8 + $0x198] sm:$0xff]
        %v1391 = vld [vmem:[#allocation8 + $0x1a0] sm:$0xff]
        %v1392 = vld [vmem:[#allocation8 + $0x1a8] sm:$0xff]
        %v1393 = vld [vmem:[#allocation8 + $0x1b0] sm:$0xff]
        %v1394 = vld [vmem:[#allocation8 + $0x1b8] sm:$0xff]
        %v1395 = vld [vmem:[#allocation8 + $0x1c0] sm:$0xff]
        %v1396 = vld [vmem:[#allocation8 + $0x1c8] sm:$0xff]
        %v1397 = vld [vmem:[#allocation8 + $0x1d0] sm:$0xff]
        %v1398 = vld [vmem:[#allocation8 + $0x1d8] sm:$0xff]
        %v1399 = vld [vmem:[#allocation8 + $0x1e0] sm:$0xff]
        %v1400 = vld [vmem:[#allocation8 + $0x1e8] sm:$0xff]
        %v1401 = vld [vmem:[#allocation8 + $0x1f0] sm:$0xff]
        %v1402 = vld [vmem:[#allocation8 + $0x1f8] sm:$0xff]
        %v1403 = vld [vmem:[%s5] sm:$0x3]
        %v1405 = vlaneseq
        %v1406 = vshrl.u32 %v1405, 7
        %v1407 = vsub.s32 0, %v1406
        %v1408 = vrot.slane %v1403, %v1407
        %v1409 = vlaneseq
        %v1410 = vshrl.u32 %v1409, 7
        %v1411 = vsub.s32 1, %v1410
        %v1412 = vrot.slane %v1403, %v1411
        %v1479 = vunpack.c.l.b16 %v1339
        %v1480 = vunpack.c.h.b16 %v1339
        %v1481 = vunpack.c.l.b16 %v1340
        %v1482 = vunpack.c.h.b16 %v1340
        %v1483 = vunpack.c.l.b16 %v1341
        %v1484 = vunpack.c.h.b16 %v1341
        %v1485 = vunpack.c.l.b16 %v1342
        %v1486 = vunpack.c.h.b16 %v1342
        %v1487 = vunpack.c.l.b16 %v1343
        %v1488 = vunpack.c.h.b16 %v1343
        %v1489 = vunpack.c.l.b16 %v1344
        %v1490 = vunpack.c.h.b16 %v1344
        %v1491 = vunpack.c.l.b16 %v1345
        %v1492 = vunpack.c.h.b16 %v1345
        %v1493 = vunpack.c.l.b16 %v1346
        %v1494 = vunpack.c.h.b16 %v1346
        %v1495 = vunpack.c.l.b16 %v1347
        %v1496 = vunpack.c.h.b16 %v1347
        %v1497 = vunpack.c.l.b16 %v1348
        %v1498 = vunpack.c.h.b16 %v1348
        %v1499 = vunpack.c.l.b16 %v1349
        %v1500 = vunpack.c.h.b16 %v1349
        %v1501 = vunpack.c.l.b16 %v1350
        %v1502 = vunpack.c.h.b16 %v1350
        %v1503 = vunpack.c.l.b16 %v1351
        %v1504 = vunpack.c.h.b16 %v1351
        %v1505 = vunpack.c.l.b16 %v1352
        %v1506 = vunpack.c.h.b16 %v1352
        %v1507 = vunpack.c.l.b16 %v1353
        %v1508 = vunpack.c.h.b16 %v1353
        %v1509 = vunpack.c.l.b16 %v1354
        %v1510 = vunpack.c.h.b16 %v1354
        %v1511 = vunpack.c.l.b16 %v1355
        %v1512 = vunpack.c.h.b16 %v1355
        %v1513 = vunpack.c.l.b16 %v1356
        %v1514 = vunpack.c.h.b16 %v1356
        %v1515 = vunpack.c.l.b16 %v1357
        %v1516 = vunpack.c.h.b16 %v1357
        %v1517 = vunpack.c.l.b16 %v1358
        %v1518 = vunpack.c.h.b16 %v1358
        %v1519 = vunpack.c.l.b16 %v1359
        %v1520 = vunpack.c.h.b16 %v1359
        %v1521 = vunpack.c.l.b16 %v1360
        %v1522 = vunpack.c.h.b16 %v1360
        %v1523 = vunpack.c.l.b16 %v1361
        %v1524 = vunpack.c.h.b16 %v1361
        %v1525 = vunpack.c.l.b16 %v1362
        %v1526 = vunpack.c.h.b16 %v1362
        %v1527 = vunpack.c.l.b16 %v1363
        %v1528 = vunpack.c.h.b16 %v1363
        %v1529 = vunpack.c.l.b16 %v1364
        %v1530 = vunpack.c.h.b16 %v1364
        %v1531 = vunpack.c.l.b16 %v1365
        %v1532 = vunpack.c.h.b16 %v1365
        %v1533 = vunpack.c.l.b16 %v1366
        %v1534 = vunpack.c.h.b16 %v1366
        %v1535 = vunpack.c.l.b16 %v1367
        %v1536 = vunpack.c.h.b16 %v1367
        %v1537 = vunpack.c.l.b16 %v1368
        %v1538 = vunpack.c.h.b16 %v1368
        %v1539 = vunpack.c.l.b16 %v1369
        %v1540 = vunpack.c.h.b16 %v1369
        %v1541 = vunpack.c.l.b16 %v1370
        %v1542 = vunpack.c.h.b16 %v1370
        %v1543 = vunpack.c.l.b16 %v1371
        %v1544 = vunpack.c.h.b16 %v1371
        %v1545 = vunpack.c.l.b16 %v1372
        %v1546 = vunpack.c.h.b16 %v1372
        %v1547 = vunpack.c.l.b16 %v1373
        %v1548 = vunpack.c.h.b16 %v1373
        %v1549 = vunpack.c.l.b16 %v1374
        %v1550 = vunpack.c.h.b16 %v1374
        %v1551 = vunpack.c.l.b16 %v1375
        %v1552 = vunpack.c.h.b16 %v1375
        %v1553 = vunpack.c.l.b16 %v1376
        %v1554 = vunpack.c.h.b16 %v1376
        %v1555 = vunpack.c.l.b16 %v1377
        %v1556 = vunpack.c.h.b16 %v1377
        %v1557 = vunpack.c.l.b16 %v1378
        %v1558 = vunpack.c.h.b16 %v1378
        %v1559 = vunpack.c.l.b16 %v1379
        %v1560 = vunpack.c.h.b16 %v1379
        %v1561 = vunpack.c.l.b16 %v1380
        %v1562 = vunpack.c.h.b16 %v1380
        %v1563 = vunpack.c.l.b16 %v1381
        %v1564 = vunpack.c.h.b16 %v1381
        %v1565 = vunpack.c.l.b16 %v1382
        %v1566 = vunpack.c.h.b16 %v1382
        %v1567 = vunpack.c.l.b16 %v1383
        %v1568 = vunpack.c.h.b16 %v1383
        %v1569 = vunpack.c.l.b16 %v1384
        %v1570 = vunpack.c.h.b16 %v1384
        %v1571 = vunpack.c.l.b16 %v1385
        %v1572 = vunpack.c.h.b16 %v1385
        %v1573 = vunpack.c.l.b16 %v1386
        %v1574 = vunpack.c.h.b16 %v1386
        %v1575 = vunpack.c.l.b16 %v1387
        %v1576 = vunpack.c.h.b16 %v1387
        %v1577 = vunpack.c.l.b16 %v1388
        %v1578 = vunpack.c.h.b16 %v1388
        %v1579 = vunpack.c.l.b16 %v1389
        %v1580 = vunpack.c.h.b16 %v1389
        %v1581 = vunpack.c.l.b16 %v1390
        %v1582 = vunpack.c.h.b16 %v1390
        %v1583 = vunpack.c.l.b16 %v1391
        %v1584 = vunpack.c.h.b16 %v1391
        %v1585 = vunpack.c.l.b16 %v1392
        %v1586 = vunpack.c.h.b16 %v1392
        %v1587 = vunpack.c.l.b16 %v1393
        %v1588 = vunpack.c.h.b16 %v1393
        %v1589 = vunpack.c.l.b16 %v1394
        %v1590 = vunpack.c.h.b16 %v1394
        %v1591 = vunpack.c.l.b16 %v1395
        %v1592 = vunpack.c.h.b16 %v1395
        %v1593 = vunpack.c.l.b16 %v1396
        %v1594 = vunpack.c.h.b16 %v1396
        %v1595 = vunpack.c.l.b16 %v1397
        %v1596 = vunpack.c.h.b16 %v1397
        %v1597 = vunpack.c.l.b16 %v1398
        %v1598 = vunpack.c.h.b16 %v1398
        %v1599 = vunpack.c.l.b16 %v1399
        %v1600 = vunpack.c.h.b16 %v1399
        %v1601 = vunpack.c.l.b16 %v1400
        %v1602 = vunpack.c.h.b16 %v1400
        %v1603 = vunpack.c.l.b16 %v1401
        %v1604 = vunpack.c.h.b16 %v1401
        %v1605 = vunpack.c.l.b16 %v1402
        %v1606 = vunpack.c.h.b16 %v1402
        %v1607 = vpack.c.b16 %v1481, %v1479
        %v1608 = vpack.c.b16 %v1482, %v1480
        %v1609 = vpack.c.b16 %v1485, %v1483
        %v1610 = vpack.c.b16 %v1486, %v1484
        %v1611 = vpack.c.b16 %v1489, %v1487
        %v1612 = vpack.c.b16 %v1490, %v1488
        %v1613 = vpack.c.b16 %v1493, %v1491
        %v1614 = vpack.c.b16 %v1494, %v1492
        %v1615 = vpack.c.b16 %v1497, %v1495
        %v1616 = vpack.c.b16 %v1498, %v1496
        %v1617 = vpack.c.b16 %v1501, %v1499
        %v1618 = vpack.c.b16 %v1502, %v1500
        %v1619 = vpack.c.b16 %v1505, %v1503
        %v1620 = vpack.c.b16 %v1506, %v1504
        %v1621 = vpack.c.b16 %v1509, %v1507
        %v1622 = vpack.c.b16 %v1510, %v1508
        %v1623 = vpack.c.b16 %v1513, %v1511
        %v1624 = vpack.c.b16 %v1514, %v1512
        %v1625 = vpack.c.b16 %v1517, %v1515
        %v1626 = vpack.c.b16 %v1518, %v1516
        %v1627 = vpack.c.b16 %v1521, %v1519
        %v1628 = vpack.c.b16 %v1522, %v1520
        %v1629 = vpack.c.b16 %v1525, %v1523
        %v1630 = vpack.c.b16 %v1526, %v1524
        %v1631 = vpack.c.b16 %v1529, %v1527
        %v1632 = vpack.c.b16 %v1530, %v1528
        %v1633 = vpack.c.b16 %v1533, %v1531
        %v1634 = vpack.c.b16 %v1534, %v1532
        %v1635 = vpack.c.b16 %v1537, %v1535
        %v1636 = vpack.c.b16 %v1538, %v1536
        %v1637 = vpack.c.b16 %v1541, %v1539
        %v1638 = vpack.c.b16 %v1542, %v1540
        %v1639 = vpack.c.b16 %v1545, %v1543
        %v1640 = vpack.c.b16 %v1546, %v1544
        %v1641 = vpack.c.b16 %v1549, %v1547
        %v1642 = vpack.c.b16 %v1550, %v1548
        %v1643 = vpack.c.b16 %v1553, %v1551
        %v1644 = vpack.c.b16 %v1554, %v1552
        %v1645 = vpack.c.b16 %v1557, %v1555
        %v1646 = vpack.c.b16 %v1558, %v1556
        %v1647 = vpack.c.b16 %v1561, %v1559
        %v1648 = vpack.c.b16 %v1562, %v1560
        %v1649 = vpack.c.b16 %v1565, %v1563
        %v1650 = vpack.c.b16 %v1566, %v1564
        %v1651 = vpack.c.b16 %v1569, %v1567
        %v1652 = vpack.c.b16 %v1570, %v1568
        %v1653 = vpack.c.b16 %v1573, %v1571
        %v1654 = vpack.c.b16 %v1574, %v1572
        %v1655 = vpack.c.b16 %v1577, %v1575
        %v1656 = vpack.c.b16 %v1578, %v1576
        %v1657 = vpack.c.b16 %v1581, %v1579
        %v1658 = vpack.c.b16 %v1582, %v1580
        %v1659 = vpack.c.b16 %v1585, %v1583
        %v1660 = vpack.c.b16 %v1586, %v1584
        %v1661 = vpack.c.b16 %v1589, %v1587
        %v1662 = vpack.c.b16 %v1590, %v1588
        %v1663 = vpack.c.b16 %v1593, %v1591
        %v1664 = vpack.c.b16 %v1594, %v1592
        %v1665 = vpack.c.b16 %v1597, %v1595
        %v1666 = vpack.c.b16 %v1598, %v1596
        %v1667 = vpack.c.b16 %v1601, %v1599
        %v1668 = vpack.c.b16 %v1602, %v1600
        %v1669 = vpack.c.b16 %v1605, %v1603
        %v1670 = vpack.c.b16 %v1606, %v1604
        %1735 = vmatprep.subr.bf16.mxu0 %v1608
        %1736 = vmatpush1.bf16.msra.mxu0 %v1607
        %1737 = vmatprep.subr.bf16.mxu0 %v1610
        %1738 = vmatpush1.bf16.msra.mxu0 %v1609
        %1739 = vmatprep.subr.bf16.mxu0 %v1612
        %1740 = vmatpush1.bf16.msra.mxu0 %v1611
        %1741 = vmatprep.subr.bf16.mxu0 %v1614
        %1742 = vmatpush1.bf16.msra.mxu0 %v1613
        %1743 = vmatprep.subr.bf16.mxu0 %v1616
        %1744 = vmatpush1.bf16.msra.mxu0 %v1615
        %1745 = vmatprep.subr.bf16.mxu0 %v1618
        %1746 = vmatpush1.bf16.msra.mxu0 %v1617
        %1747 = vmatprep.subr.bf16.mxu0 %v1620
        %1748 = vmatpush1.bf16.msra.mxu0 %v1619
        %1749 = vmatprep.subr.bf16.mxu0 %v1622
        %1750 = vmatpush1.bf16.msra.mxu0 %v1621
        %1751 = vmatprep.subr.bf16.mxu0 %v1624
        %1752 = vmatpush1.bf16.msra.mxu0 %v1623
        %1753 = vmatprep.subr.bf16.mxu0 %v1626
        %1754 = vmatpush1.bf16.msra.mxu0 %v1625
        %1755 = vmatprep.subr.bf16.mxu0 %v1628
        %1756 = vmatpush1.bf16.msra.mxu0 %v1627
        %1757 = vmatprep.subr.bf16.mxu0 %v1630
        %1758 = vmatpush1.bf16.msra.mxu0 %v1629
        %1759 = vmatprep.subr.bf16.mxu0 %v1632
        %1760 = vmatpush1.bf16.msra.mxu0 %v1631
        %1761 = vmatprep.subr.bf16.mxu0 %v1634
        %1762 = vmatpush1.bf16.msra.mxu0 %v1633
        %1763 = vmatprep.subr.bf16.mxu0 %v1636
        %1764 = vmatpush1.bf16.msra.mxu0 %v1635
        %1765 = vmatprep.subr.bf16.mxu0 %v1638
        %1766 = vmatpush1.bf16.msra.mxu0 %v1637
        %1767 = vmatprep.mubr.bf16.mxu0 %v1336
        %1768 = vmatmul.mubr.bf16.gmra.mrb[0].mxu0 %v1335
        %v1769 = vpop.f32.mrb[0].mxu0
        %v1770 = vadd.f32 %v1408, %v1769
        %v1771 = vpop.f32.mrb[0].mxu0
        %v1772 = vadd.f32 %v1412, %v1771
        %v1773 = vpop.f32.mrb[0].mxu0
        %v1774 = vpop.f32.mrb[0].mxu0
        %1775 = vdwg.mxu0
        %1776 = vmatprep.subr.bf16.mxu0 %v1640
        %1777 = vmatpush1.bf16.msra.mxu0 %v1639
        %1778 = vmatprep.subr.bf16.mxu0 %v1642
        %1779 = vmatpush1.bf16.msra.mxu0 %v1641
        %1780 = vmatprep.subr.bf16.mxu0 %v1644
        %1781 = vmatpush1.bf16.msra.mxu0 %v1643
        %1782 = vmatprep.subr.bf16.mxu0 %v1646
        %1783 = vmatpush1.bf16.msra.mxu0 %v1645
        %1784 = vmatprep.subr.bf16.mxu0 %v1648
        %1785 = vmatpush1.bf16.msra.mxu0 %v1647
        %1786 = vmatprep.subr.bf16.mxu0 %v1650
        %1787 = vmatpush1.bf16.msra.mxu0 %v1649
        %1788 = vmatprep.subr.bf16.mxu0 %v1652
        %1789 = vmatpush1.bf16.msra.mxu0 %v1651
        %1790 = vmatprep.subr.bf16.mxu0 %v1654
        %1791 = vmatpush1.bf16.msra.mxu0 %v1653
        %1792 = vmatprep.subr.bf16.mxu0 %v1656
        %1793 = vmatpush1.bf16.msra.mxu0 %v1655
        %1794 = vmatprep.subr.bf16.mxu0 %v1658
        %1795 = vmatpush1.bf16.msra.mxu0 %v1657
        %1796 = vmatprep.subr.bf16.mxu0 %v1660
        %1797 = vmatpush1.bf16.msra.mxu0 %v1659
        %1798 = vmatprep.subr.bf16.mxu0 %v1662
        %1799 = vmatpush1.bf16.msra.mxu0 %v1661
        %1800 = vmatprep.subr.bf16.mxu0 %v1664
        %1801 = vmatpush1.bf16.msra.mxu0 %v1663
        %1802 = vmatprep.subr.bf16.mxu0 %v1666
        %1803 = vmatpush1.bf16.msra.mxu0 %v1665
        %1804 = vmatprep.subr.bf16.mxu0 %v1668
        %1805 = vmatpush1.bf16.msra.mxu0 %v1667
        %1806 = vmatprep.subr.bf16.mxu0 %v1670
        %1807 = vmatpush1.bf16.msra.mxu0 %v1669
        %1808 = vmatprep.mubr.bf16.mxu0 %v1338
        %1809 = vmatmul.mubr.bf16.gmra.mrb[0].mxu0 %v1337
        %v1810 = vpop.f32.mrb[0].mxu0
        %v1811 = vadd.f32 %v1770, %v1810
        %v1812 = vpop.f32.mrb[0].mxu0
        %v1813 = vadd.f32 %v1772, %v1812
        %v1814 = vpop.f32.mrb[0].mxu0
        %v1815 = vpop.f32.mrb[0].mxu0
        %1816 = vdwg.mxu0
        %v1817 = vadd.f32 %v557, %v1811
        %v1818 = vadd.f32 %v558, %v1813
        %v1819 = vld [vmem:[%s12] sm:$0x3]
        %v1820 = vld [vmem:[%s13] sm:$0x3]
        %1821 = vmatprep.subr.mxu0 %v560
        %1822 = vmatpush1.msra.mxu0 %v559
        %1823 = vmatprep.subr.mxu0 %v562
        %1824 = vmatpush1.msra.mxu0 %v561
        %1825 = vmatprep.subr.mxu0 %v564
        %1826 = vmatpush1.msra.mxu0 %v563
        %1827 = vmatprep.subr.mxu0 %v566
        %1828 = vmatpush1.msra.mxu0 %v565
        %1829 = vmatprep.subr.mxu0 %v568
        %1830 = vmatpush1.msra.mxu0 %v567
        %1831 = vmatprep.subr.mxu0 %v570
        %1832 = vmatpush1.msra.mxu0 %v569
        %1833 = vmatprep.subr.mxu0 %v572
        %1834 = vmatpush1.msra.mxu0 %v571
        %1835 = vmatprep.subr.mxu0 %v574
        %1836 = vmatpush1.msra.mxu0 %v573
        %1837 = vmatprep.subr.mxu0 %v576
        %1838 = vmatpush1.msra.mxu0 %v575
        %1839 = vmatprep.subr.mxu0 %v578
        %1840 = vmatpush1.msra.mxu0 %v577
        %1841 = vmatprep.subr.mxu0 %v580
        %1842 = vmatpush1.msra.mxu0 %v579
        %1843 = vmatprep.subr.mxu0 %v582
        %1844 = vmatpush1.msra.mxu0 %v581
        %1845 = vmatprep.subr.mxu0 %v584
        %1846 = vmatpush1.msra.mxu0 %v583
        %1847 = vmatprep.subr.mxu0 %v586
        %1848 = vmatpush1.msra.mxu0 %v585
        %1849 = vmatprep.subr.mxu0 %v588
        %1850 = vmatpush1.msra.mxu0 %v587
        %1851 = vmatprep.subr.mxu0 %v590
        %1852 = vmatpush1.msra.mxu0 %v589
        %1853 = vmatprep.subr.mxu0 %v592
        %1854 = vmatpush1.msra.mxu0 %v591
        %1855 = vmatprep.subr.mxu0 %v594
        %1856 = vmatpush1.msra.mxu0 %v593
        %1857 = vmatprep.subr.mxu0 %v596
        %1858 = vmatpush1.msra.mxu0 %v595
        %1859 = vmatprep.subr.mxu0 %v598
        %1860 = vmatpush1.msra.mxu0 %v597
        %1861 = vmatprep.subr.mxu0 %v600
        %1862 = vmatpush1.msra.mxu0 %v599
        %1863 = vmatprep.subr.mxu0 %v602
        %1864 = vmatpush1.msra.mxu0 %v601
        %1865 = vmatprep.subr.mxu0 %v604
        %1866 = vmatpush1.msra.mxu0 %v603
        %1867 = vmatprep.subr.mxu0 %v606
        %1868 = vmatpush1.msra.mxu0 %v605
        %1869 = vmatprep.subr.mxu0 %v608
        %1870 = vmatpush1.msra.mxu0 %v607
        %1871 = vmatprep.subr.mxu0 %v610
        %1872 = vmatpush1.msra.mxu0 %v609
        %1873 = vmatprep.subr.mxu0 %v612
        %1874 = vmatpush1.msra.mxu0 %v611
        %1875 = vmatprep.subr.mxu0 %v614
        %1876 = vmatpush1.msra.mxu0 %v613
        %1877 = vmatprep.subr.mxu0 %v616
        %1878 = vmatpush1.msra.mxu0 %v615
        %1879 = vmatprep.subr.mxu0 %v618
        %1880 = vmatpush1.msra.mxu0 %v617
        %1881 = vmatprep.subr.mxu0 %v620
        %1882 = vmatpush1.msra.mxu0 %v619
        %1883 = vmatprep.subr.mxu0 %v622
        %1884 = vmatpush1.msra.mxu0 %v621
        %1885 = vmatprep.mubr.f32.mxu0 %v1818
        %1886 = vmatmul.mubr.f32.gmra.mrb[0].mxu0 %v1817
        %v1887 = vpop.f32.mrb[0].mxu0
        %v1888 = vadd.f32 0.0, %v1887
        %v1889 = vpop.f32.mrb[0].mxu0
        %v1890 = vadd.f32 0.0, %v1889
        %1891 = vdwg.mxu0
        %v1892 = vmul.f32 %v1817, %v1817
        %v1893 = vmul.f32 %v1818, %v1818
        %1894 = vmatprep.subr.mxu0 %v560
        %1895 = vmatpush1.msra.mxu0 %v559
        %1896 = vmatprep.subr.mxu0 %v562
        %1897 = vmatpush1.msra.mxu0 %v561
        %1898 = vmatprep.subr.mxu0 %v564
        %1899 = vmatpush1.msra.mxu0 %v563
        %1900 = vmatprep.subr.mxu0 %v566
        %1901 = vmatpush1.msra.mxu0 %v565
        %1902 = vmatprep.subr.mxu0 %v568
        %1903 = vmatpush1.msra.mxu0 %v567
        %1904 = vmatprep.subr.mxu0 %v570
        %1905 = vmatpush1.msra.mxu0 %v569
        %1906 = vmatprep.subr.mxu0 %v572
        %1907 = vmatpush1.msra.mxu0 %v571
        %1908 = vmatprep.subr.mxu0 %v574
        %1909 = vmatpush1.msra.mxu0 %v573
        %1910 = vmatprep.subr.mxu0 %v576
        %1911 = vmatpush1.msra.mxu0 %v575
        %1912 = vmatprep.subr.mxu0 %v578
        %1913 = vmatpush1.msra.mxu0 %v577
        %1914 = vmatprep.subr.mxu0 %v580
        %1915 = vmatpush1.msra.mxu0 %v579
        %1916 = vmatprep.subr.mxu0 %v582
        %1917 = vmatpush1.msra.mxu0 %v581
        %1918 = vmatprep.subr.mxu0 %v584
        %1919 = vmatpush1.msra.mxu0 %v583
        %1920 = vmatprep.subr.mxu0 %v586
        %1921 = vmatpush1.msra.mxu0 %v585
        %1922 = vmatprep.subr.mxu0 %v588
        %1923 = vmatpush1.msra.mxu0 %v587
        %1924 = vmatprep.subr.mxu0 %v590
        %1925 = vmatpush1.msra.mxu0 %v589
        %1926 = vmatprep.subr.mxu0 %v592
        %1927 = vmatpush1.msra.mxu0 %v591
        %1928 = vmatprep.subr.mxu0 %v594
        %1929 = vmatpush1.msra.mxu0 %v593
        %1930 = vmatprep.subr.mxu0 %v596
        %1931 = vmatpush1.msra.mxu0 %v595
        %1932 = vmatprep.subr.mxu0 %v598
        %1933 = vmatpush1.msra.mxu0 %v597
        %1934 = vmatprep.subr.mxu0 %v600
        %1935 = vmatpush1.msra.mxu0 %v599
        %1936 = vmatprep.subr.mxu0 %v602
        %1937 = vmatpush1.msra.mxu0 %v601
        %1938 = vmatprep.subr.mxu0 %v604
        %1939 = vmatpush1.msra.mxu0 %v603
        %1940 = vmatprep.subr.mxu0 %v606
        %1941 = vmatpush1.msra.mxu0 %v605
        %1942 = vmatprep.subr.mxu0 %v608
        %1943 = vmatpush1.msra.mxu0 %v607
        %1944 = vmatprep.subr.mxu0 %v610
        %1945 = vmatpush1.msra.mxu0 %v609
        %1946 = vmatprep.subr.mxu0 %v612
        %1947 = vmatpush1.msra.mxu0 %v611
        %1948 = vmatprep.subr.mxu0 %v614
        %1949 = vmatpush1.msra.mxu0 %v613
        %1950 = vmatprep.subr.mxu0 %v616
        %1951 = vmatpush1.msra.mxu0 %v615
        %1952 = vmatprep.subr.mxu0 %v618
        %1953 = vmatpush1.msra.mxu0 %v617
        %1954 = vmatprep.subr.mxu0 %v620
        %1955 = vmatpush1.msra.mxu0 %v619
        %1956 = vmatprep.subr.mxu0 %v622
        %1957 = vmatpush1.msra.mxu0 %v621
        %1958 = vmatprep.mubr.f32.mxu0 %v1893
        %1959 = vmatmul.mubr.f32.gmra.mrb[0].mxu0 %v1892
        %v1960 = vpop.f32.mrb[0].mxu0
        %v1961 = vadd.f32 0.0, %v1960
        %v1962 = vpop.f32.mrb[0].mxu0
        %v1963 = vadd.f32 0.0, %v1962
        %1964 = vdwg.mxu0
        %v1965 = vmul.f32 %v1888, %v1888
        %v1966 = vmul.f32 %v1890, %v1890
        %v1967 = vsub.f32 %v1961, %v1965
        %v1968 = vsub.f32 %v1963, %v1966
        %v1969 = vadd.f32 %v1967, 1e-05
        %v1970 = vadd.f32 %v1968, 1e-05
        %v1971 = vrsqrt.pop %v1969
        %v1972 = vrsqrt.pop %v1970
        %v1974 = vlaneseq
        %v1975 = vshrl.u32 %v1974, 7
        %v1976 = vsub.s32 0, %v1975
        %v1977 = vrot.slane %v1819, %v1976
        %v1978 = vlaneseq
        %v1979 = vshrl.u32 %v1978, 7
        %v1980 = vsub.s32 1, %v1979
        %v1981 = vrot.slane %v1819, %v1980
        %v1984 = vmul.f32 %v1977, %v1971
        %v1985 = vmul.f32 %v1981, %v1972
        %v1986 = vmul.f32 %v1817, %v1984
        %v1987 = vmul.f32 %v1818, %v1985
        %v1988 = vmul.f32 %v1888, %v1984
        %v1989 = vmul.f32 %v1890, %v1985
        %v1991 = vlaneseq
        %v1992 = vshrl.u32 %v1991, 7
        %v1993 = vsub.s32 0, %v1992
        %v1994 = vrot.slane %v1820, %v1993
        %v1995 = vlaneseq
        %v1996 = vshrl.u32 %v1995, 7
        %v1997 = vsub.s32 1, %v1996
        %v1998 = vrot.slane %v1820, %v1997
        %v2001 = vsub.f32 %v1994, %v1988
        %v2002 = vsub.f32 %v1998, %v1989
        %v2003 = vadd.f32 %v1986, %v2001
        %v2004 = vadd.f32 %v1987, %v2002
        %v2005 = vpack.c.bf16 %v2003, %v2003
        %v2006 = vpack.c.bf16 %v2004, %v2004
        %v2007 = vld [vmem:[#allocation10] sm:$0xff]
        %v2008 = vld [vmem:[#allocation10 + $0x8] sm:$0xff]
        %v2009 = vld [vmem:[#allocation10 + $0x10] sm:$0xff]
        %v2010 = vld [vmem:[#allocation10 + $0x18] sm:$0xff]
        %v2011 = vld [vmem:[#allocation10 + $0x20] sm:$0xff]
        %v2012 = vld [vmem:[#allocation10 + $0x28] sm:$0xff]
        %v2013 = vld [vmem:[#allocation10 + $0x30] sm:$0xff]
        %v2014 = vld [vmem:[#allocation10 + $0x38] sm:$0xff]
        %v2015 = vld [vmem:[#allocation10 + $0x40] sm:$0xff]
        %v2016 = vld [vmem:[#allocation10 + $0x48] sm:$0xff]
        %v2017 = vld [vmem:[#allocation10 + $0x50] sm:$0xff]
        %v2018 = vld [vmem:[#allocation10 + $0x58] sm:$0xff]
        %v2019 = vld [vmem:[#allocation10 + $0x60] sm:$0xff]
        %v2020 = vld [vmem:[#allocation10 + $0x68] sm:$0xff]
        %v2021 = vld [vmem:[#allocation10 + $0x70] sm:$0xff]
        %v2022 = vld [vmem:[#allocation10 + $0x78] sm:$0xff]
        %v2023 = vld [vmem:[#allocation10 + $0x80] sm:$0xff]
        %v2024 = vld [vmem:[#allocation10 + $0x88] sm:$0xff]
        %v2025 = vld [vmem:[#allocation10 + $0x90] sm:$0xff]
        %v2026 = vld [vmem:[#allocation10 + $0x98] sm:$0xff]
        %v2027 = vld [vmem:[#allocation10 + $0xa0] sm:$0xff]
        %v2028 = vld [vmem:[#allocation10 + $0xa8] sm:$0xff]
        %v2029 = vld [vmem:[#allocation10 + $0xb0] sm:$0xff]
        %v2030 = vld [vmem:[#allocation10 + $0xb8] sm:$0xff]
        %v2031 = vld [vmem:[#allocation10 + $0xc0] sm:$0xff]
        %v2032 = vld [vmem:[#allocation10 + $0xc8] sm:$0xff]
        %v2033 = vld [vmem:[#allocation10 + $0xd0] sm:$0xff]
        %v2034 = vld [vmem:[#allocation10 + $0xd8] sm:$0xff]
        %v2035 = vld [vmem:[#allocation10 + $0xe0] sm:$0xff]
        %v2036 = vld [vmem:[#allocation10 + $0xe8] sm:$0xff]
        %v2037 = vld [vmem:[#allocation10 + $0xf0] sm:$0xff]
        %v2038 = vld [vmem:[#allocation10 + $0xf8] sm:$0xff]
        %v2039 = vld [vmem:[#allocation10 + $0x100] sm:$0xff]
        %v2040 = vld [vmem:[#allocation10 + $0x108] sm:$0xff]
        %v2041 = vld [vmem:[#allocation10 + $0x110] sm:$0xff]
        %v2042 = vld [vmem:[#allocation10 + $0x118] sm:$0xff]
        %v2043 = vld [vmem:[#allocation10 + $0x120] sm:$0xff]
        %v2044 = vld [vmem:[#allocation10 + $0x128] sm:$0xff]
        %v2045 = vld [vmem:[#allocation10 + $0x130] sm:$0xff]
        %v2046 = vld [vmem:[#allocation10 + $0x138] sm:$0xff]
        %v2047 = vld [vmem:[#allocation10 + $0x140] sm:$0xff]
        %v2048 = vld [vmem:[#allocation10 + $0x148] sm:$0xff]
        %v2049 = vld [vmem:[#allocation10 + $0x150] sm:$0xff]
        %v2050 = vld [vmem:[#allocation10 + $0x158] sm:$0xff]
        %v2051 = vld [vmem:[#allocation10 + $0x160] sm:$0xff]
        %v2052 = vld [vmem:[#allocation10 + $0x168] sm:$0xff]
        %v2053 = vld [vmem:[#allocation10 + $0x170] sm:$0xff]
        %v2054 = vld [vmem:[#allocation10 + $0x178] sm:$0xff]
        %v2055 = vld [vmem:[#allocation10 + $0x180] sm:$0xff]
        %v2056 = vld [vmem:[#allocation10 + $0x188] sm:$0xff]
        %v2057 = vld [vmem:[#allocation10 + $0x190] sm:$0xff]
        %v2058 = vld [vmem:[#allocation10 + $0x198] sm:$0xff]
        %v2059 = vld [vmem:[#allocation10 + $0x1a0] sm:$0xff]
        %v2060 = vld [vmem:[#allocation10 + $0x1a8] sm:$0xff]
        %v2061 = vld [vmem:[#allocation10 + $0x1b0] sm:$0xff]
        %v2062 = vld [vmem:[#allocation10 + $0x1b8] sm:$0xff]
        %v2063 = vld [vmem:[#allocation10 + $0x1c0] sm:$0xff]
        %v2064 = vld [vmem:[#allocation10 + $0x1c8] sm:$0xff]
        %v2065 = vld [vmem:[#allocation10 + $0x1d0] sm:$0xff]
        %v2066 = vld [vmem:[#allocation10 + $0x1d8] sm:$0xff]
        %v2067 = vld [vmem:[#allocation10 + $0x1e0] sm:$0xff]
        %v2068 = vld [vmem:[#allocation10 + $0x1e8] sm:$0xff]
        %v2069 = vld [vmem:[#allocation10 + $0x1f0] sm:$0xff]
        %v2070 = vld [vmem:[#allocation10 + $0x1f8] sm:$0xff]
        %v2071 = vld [vmem:[%s7] sm:$0xf]
        %v2073 = vlaneseq
        %v2074 = vshrl.u32 %v2073, 7
        %v2075 = vsub.s32 0, %v2074
        %v2076 = vrot.slane %v2071, %v2075
        %v2077 = vlaneseq
        %v2078 = vshrl.u32 %v2077, 7
        %v2079 = vsub.s32 1, %v2078
        %v2080 = vrot.slane %v2071, %v2079
        %v2081 = vlaneseq
        %v2082 = vshrl.u32 %v2081, 7
        %v2083 = vsub.s32 2, %v2082
        %v2084 = vrot.slane %v2071, %v2083
        %v2085 = vlaneseq
        %v2086 = vshrl.u32 %v2085, 7
        %v2087 = vsub.s32 3, %v2086
        %v2088 = vrot.slane %v2071, %v2087
        %v2157 = vunpack.c.l.b16 %v2007
        %v2158 = vunpack.c.h.b16 %v2007
        %v2159 = vunpack.c.l.b16 %v2008
        %v2160 = vunpack.c.h.b16 %v2008
        %v2161 = vunpack.c.l.b16 %v2009
        %v2162 = vunpack.c.h.b16 %v2009
        %v2163 = vunpack.c.l.b16 %v2010
        %v2164 = vunpack.c.h.b16 %v2010
        %v2165 = vunpack.c.l.b16 %v2011
        %v2166 = vunpack.c.h.b16 %v2011
        %v2167 = vunpack.c.l.b16 %v2012
        %v2168 = vunpack.c.h.b16 %v2012
        %v2169 = vunpack.c.l.b16 %v2013
        %v2170 = vunpack.c.h.b16 %v2013
        %v2171 = vunpack.c.l.b16 %v2014
        %v2172 = vunpack.c.h.b16 %v2014
        %v2173 = vunpack.c.l.b16 %v2015
        %v2174 = vunpack.c.h.b16 %v2015
        %v2175 = vunpack.c.l.b16 %v2016
        %v2176 = vunpack.c.h.b16 %v2016
        %v2177 = vunpack.c.l.b16 %v2017
        %v2178 = vunpack.c.h.b16 %v2017
        %v2179 = vunpack.c.l.b16 %v2018
        %v2180 = vunpack.c.h.b16 %v2018
        %v2181 = vunpack.c.l.b16 %v2019
        %v2182 = vunpack.c.h.b16 %v2019
        %v2183 = vunpack.c.l.b16 %v2020
        %v2184 = vunpack.c.h.b16 %v2020
        %v2185 = vunpack.c.l.b16 %v2021
        %v2186 = vunpack.c.h.b16 %v2021
        %v2187 = vunpack.c.l.b16 %v2022
        %v2188 = vunpack.c.h.b16 %v2022
        %v2189 = vunpack.c.l.b16 %v2023
        %v2190 = vunpack.c.h.b16 %v2023
        %v2191 = vunpack.c.l.b16 %v2024
        %v2192 = vunpack.c.h.b16 %v2024
        %v2193 = vunpack.c.l.b16 %v2025
        %v2194 = vunpack.c.h.b16 %v2025
        %v2195 = vunpack.c.l.b16 %v2026
        %v2196 = vunpack.c.h.b16 %v2026
        %v2197 = vunpack.c.l.b16 %v2027
        %v2198 = vunpack.c.h.b16 %v2027
        %v2199 = vunpack.c.l.b16 %v2028
        %v2200 = vunpack.c.h.b16 %v2028
        %v2201 = vunpack.c.l.b16 %v2029
        %v2202 = vunpack.c.h.b16 %v2029
        %v2203 = vunpack.c.l.b16 %v2030
        %v2204 = vunpack.c.h.b16 %v2030
        %v2205 = vunpack.c.l.b16 %v2031
        %v2206 = vunpack.c.h.b16 %v2031
        %v2207 = vunpack.c.l.b16 %v2032
        %v2208 = vunpack.c.h.b16 %v2032
        %v2209 = vunpack.c.l.b16 %v2033
        %v2210 = vunpack.c.h.b16 %v2033
        %v2211 = vunpack.c.l.b16 %v2034
        %v2212 = vunpack.c.h.b16 %v2034
        %v2213 = vunpack.c.l.b16 %v2035
        %v2214 = vunpack.c.h.b16 %v2035
        %v2215 = vunpack.c.l.b16 %v2036
        %v2216 = vunpack.c.h.b16 %v2036
        %v2217 = vunpack.c.l.b16 %v2037
        %v2218 = vunpack.c.h.b16 %v2037
        %v2219 = vunpack.c.l.b16 %v2038
        %v2220 = vunpack.c.h.b16 %v2038
        %v2221 = vunpack.c.l.b16 %v2039
        %v2222 = vunpack.c.h.b16 %v2039
        %v2223 = vunpack.c.l.b16 %v2040
        %v2224 = vunpack.c.h.b16 %v2040
        %v2225 = vunpack.c.l.b16 %v2041
        %v2226 = vunpack.c.h.b16 %v2041
        %v2227 = vunpack.c.l.b16 %v2042
        %v2228 = vunpack.c.h.b16 %v2042
        %v2229 = vunpack.c.l.b16 %v2043
        %v2230 = vunpack.c.h.b16 %v2043
        %v2231 = vunpack.c.l.b16 %v2044
        %v2232 = vunpack.c.h.b16 %v2044
        %v2233 = vunpack.c.l.b16 %v2045
        %v2234 = vunpack.c.h.b16 %v2045
        %v2235 = vunpack.c.l.b16 %v2046
        %v2236 = vunpack.c.h.b16 %v2046
        %v2237 = vunpack.c.l.b16 %v2047
        %v2238 = vunpack.c.h.b16 %v2047
        %v2239 = vunpack.c.l.b16 %v2048
        %v2240 = vunpack.c.h.b16 %v2048
        %v2241 = vunpack.c.l.b16 %v2049
        %v2242 = vunpack.c.h.b16 %v2049
        %v2243 = vunpack.c.l.b16 %v2050
        %v2244 = vunpack.c.h.b16 %v2050
        %v2245 = vunpack.c.l.b16 %v2051
        %v2246 = vunpack.c.h.b16 %v2051
        %v2247 = vunpack.c.l.b16 %v2052
        %v2248 = vunpack.c.h.b16 %v2052
        %v2249 = vunpack.c.l.b16 %v2053
        %v2250 = vunpack.c.h.b16 %v2053
        %v2251 = vunpack.c.l.b16 %v2054
        %v2252 = vunpack.c.h.b16 %v2054
        %v2253 = vunpack.c.l.b16 %v2055
        %v2254 = vunpack.c.h.b16 %v2055
        %v2255 = vunpack.c.l.b16 %v2056
        %v2256 = vunpack.c.h.b16 %v2056
        %v2257 = vunpack.c.l.b16 %v2057
        %v2258 = vunpack.c.h.b16 %v2057
        %v2259 = vunpack.c.l.b16 %v2058
        %v2260 = vunpack.c.h.b16 %v2058
        %v2261 = vunpack.c.l.b16 %v2059
        %v2262 = vunpack.c.h.b16 %v2059
        %v2263 = vunpack.c.l.b16 %v2060
        %v2264 = vunpack.c.h.b16 %v2060
        %v2265 = vunpack.c.l.b16 %v2061
        %v2266 = vunpack.c.h.b16 %v2061
        %v2267 = vunpack.c.l.b16 %v2062
        %v2268 = vunpack.c.h.b16 %v2062
        %v2269 = vunpack.c.l.b16 %v2063
        %v2270 = vunpack.c.h.b16 %v2063
        %v2271 = vunpack.c.l.b16 %v2064
        %v2272 = vunpack.c.h.b16 %v2064
        %v2273 = vunpack.c.l.b16 %v2065
        %v2274 = vunpack.c.h.b16 %v2065
        %v2275 = vunpack.c.l.b16 %v2066
        %v2276 = vunpack.c.h.b16 %v2066
        %v2277 = vunpack.c.l.b16 %v2067
        %v2278 = vunpack.c.h.b16 %v2067
        %v2279 = vunpack.c.l.b16 %v2068
        %v2280 = vunpack.c.h.b16 %v2068
        %v2281 = vunpack.c.l.b16 %v2069
        %v2282 = vunpack.c.h.b16 %v2069
        %v2283 = vunpack.c.l.b16 %v2070
        %v2284 = vunpack.c.h.b16 %v2070
        %v2285 = vpack.c.b16 %v2161, %v2157
        %v2286 = vpack.c.b16 %v2162, %v2158
        %v2287 = vpack.c.b16 %v2163, %v2159
        %v2288 = vpack.c.b16 %v2164, %v2160
        %v2289 = vpack.c.b16 %v2169, %v2165
        %v2290 = vpack.c.b16 %v2170, %v2166
        %v2291 = vpack.c.b16 %v2171, %v2167
        %v2292 = vpack.c.b16 %v2172, %v2168
        %v2293 = vpack.c.b16 %v2177, %v2173
        %v2294 = vpack.c.b16 %v2178, %v2174
        %v2295 = vpack.c.b16 %v2179, %v2175
        %v2296 = vpack.c.b16 %v2180, %v2176
        %v2297 = vpack.c.b16 %v2185, %v2181
        %v2298 = vpack.c.b16 %v2186, %v2182
        %v2299 = vpack.c.b16 %v2187, %v2183
        %v2300 = vpack.c.b16 %v2188, %v2184
        %v2301 = vpack.c.b16 %v2193, %v2189
        %v2302 = vpack.c.b16 %v2194, %v2190
        %v2303 = vpack.c.b16 %v2195, %v2191
        %v2304 = vpack.c.b16 %v2196, %v2192
        %v2305 = vpack.c.b16 %v2201, %v2197
        %v2306 = vpack.c.b16 %v2202, %v2198
        %v2307 = vpack.c.b16 %v2203, %v2199
        %v2308 = vpack.c.b16 %v2204, %v2200
        %v2309 = vpack.c.b16 %v2209, %v2205
        %v2310 = vpack.c.b16 %v2210, %v2206
        %v2311 = vpack.c.b16 %v2211, %v2207
        %v2312 = vpack.c.b16 %v2212, %v2208
        %v2313 = vpack.c.b16 %v2217, %v2213
        %v2314 = vpack.c.b16 %v2218, %v2214
        %v2315 = vpack.c.b16 %v2219, %v2215
        %v2316 = vpack.c.b16 %v2220, %v2216
        %v2317 = vpack.c.b16 %v2225, %v2221
        %v2318 = vpack.c.b16 %v2226, %v2222
        %v2319 = vpack.c.b16 %v2227, %v2223
        %v2320 = vpack.c.b16 %v2228, %v2224
        %v2321 = vpack.c.b16 %v2233, %v2229
        %v2322 = vpack.c.b16 %v2234, %v2230
        %v2323 = vpack.c.b16 %v2235, %v2231
        %v2324 = vpack.c.b16 %v2236, %v2232
        %v2325 = vpack.c.b16 %v2241, %v2237
        %v2326 = vpack.c.b16 %v2242, %v2238
        %v2327 = vpack.c.b16 %v2243, %v2239
        %v2328 = vpack.c.b16 %v2244, %v2240
        %v2329 = vpack.c.b16 %v2249, %v2245
        %v2330 = vpack.c.b16 %v2250, %v2246
        %v2331 = vpack.c.b16 %v2251, %v2247
        %v2332 = vpack.c.b16 %v2252, %v2248
        %v2333 = vpack.c.b16 %v2257, %v2253
        %v2334 = vpack.c.b16 %v2258, %v2254
        %v2335 = vpack.c.b16 %v2259, %v2255
        %v2336 = vpack.c.b16 %v2260, %v2256
        %v2337 = vpack.c.b16 %v2265, %v2261
        %v2338 = vpack.c.b16 %v2266, %v2262
        %v2339 = vpack.c.b16 %v2267, %v2263
        %v2340 = vpack.c.b16 %v2268, %v2264
        %v2341 = vpack.c.b16 %v2273, %v2269
        %v2342 = vpack.c.b16 %v2274, %v2270
        %v2343 = vpack.c.b16 %v2275, %v2271
        %v2344 = vpack.c.b16 %v2276, %v2272
        %v2345 = vpack.c.b16 %v2281, %v2277
        %v2346 = vpack.c.b16 %v2282, %v2278
        %v2347 = vpack.c.b16 %v2283, %v2279
        %v2348 = vpack.c.b16 %v2284, %v2280
        %2413 = vmatprep.subr.bf16.mxu0 %v2286
        %2414 = vmatpush1.bf16.msra.mxu0 %v2285
        %2415 = vmatprep.subr.bf16.mxu0 %v2290
        %2416 = vmatpush1.bf16.msra.mxu0 %v2289
        %2417 = vmatprep.subr.bf16.mxu0 %v2294
        %2418 = vmatpush1.bf16.msra.mxu0 %v2293
        %2419 = vmatprep.subr.bf16.mxu0 %v2298
        %2420 = vmatpush1.bf16.msra.mxu0 %v2297
        %2421 = vmatprep.subr.bf16.mxu0 %v2302
        %2422 = vmatpush1.bf16.msra.mxu0 %v2301
        %2423 = vmatprep.subr.bf16.mxu0 %v2306
        %2424 = vmatpush1.bf16.msra.mxu0 %v2305
        %2425 = vmatprep.subr.bf16.mxu0 %v2310
        %2426 = vmatpush1.bf16.msra.mxu0 %v2309
        %2427 = vmatprep.subr.bf16.mxu0 %v2314
        %2428 = vmatpush1.bf16.msra.mxu0 %v2313
        %2429 = vmatprep.subr.bf16.mxu0 %v2318
        %2430 = vmatpush1.bf16.msra.mxu0 %v2317
        %2431 = vmatprep.subr.bf16.mxu0 %v2322
        %2432 = vmatpush1.bf16.msra.mxu0 %v2321
        %2433 = vmatprep.subr.bf16.mxu0 %v2326
        %2434 = vmatpush1.bf16.msra.mxu0 %v2325
        %2435 = vmatprep.subr.bf16.mxu0 %v2330
        %2436 = vmatpush1.bf16.msra.mxu0 %v2329
        %2437 = vmatprep.subr.bf16.mxu0 %v2334
        %2438 = vmatpush1.bf16.msra.mxu0 %v2333
        %2439 = vmatprep.subr.bf16.mxu0 %v2338
        %2440 = vmatpush1.bf16.msra.mxu0 %v2337
        %2441 = vmatprep.subr.bf16.mxu0 %v2342
        %2442 = vmatpush1.bf16.msra.mxu0 %v2341
        %2443 = vmatprep.subr.bf16.mxu0 %v2346
        %2444 = vmatpush1.bf16.msra.mxu0 %v2345
        %2445 = vmatprep.mubr.bf16.mxu0 %v2006
        %2446 = vmatmul.mubr.bf16.gmra.mrb[0].mxu0 %v2005
        %v2447 = vpop.f32.mrb[0].mxu0
        %v2448 = vadd.f32 %v2076, %v2447
        %v2449 = vpop.f32.mrb[0].mxu0
        %v2450 = vadd.f32 %v2080, %v2449
        %v2451 = vpop.f32.mrb[0].mxu0
        %v2452 = vpop.f32.mrb[0].mxu0
        %2453 = vdwg.mxu0
        %2454 = vmatprep.subr.bf16.mxu0 %v2288
        %2455 = vmatpush1.bf16.msra.mxu0 %v2287
        %2456 = vmatprep.subr.bf16.mxu0 %v2292
        %2457 = vmatpush1.bf16.msra.mxu0 %v2291
        %2458 = vmatprep.subr.bf16.mxu0 %v2296
        %2459 = vmatpush1.bf16.msra.mxu0 %v2295
        %2460 = vmatprep.subr.bf16.mxu0 %v2300
        %2461 = vmatpush1.bf16.msra.mxu0 %v2299
        %2462 = vmatprep.subr.bf16.mxu0 %v2304
        %2463 = vmatpush1.bf16.msra.mxu0 %v2303
        %2464 = vmatprep.subr.bf16.mxu0 %v2308
        %2465 = vmatpush1.bf16.msra.mxu0 %v2307
        %2466 = vmatprep.subr.bf16.mxu0 %v2312
        %2467 = vmatpush1.bf16.msra.mxu0 %v2311
        %2468 = vmatprep.subr.bf16.mxu0 %v2316
        %2469 = vmatpush1.bf16.msra.mxu0 %v2315
        %2470 = vmatprep.subr.bf16.mxu0 %v2320
        %2471 = vmatpush1.bf16.msra.mxu0 %v2319
        %2472 = vmatprep.subr.bf16.mxu0 %v2324
        %2473 = vmatpush1.bf16.msra.mxu0 %v2323
        %2474 = vmatprep.subr.bf16.mxu0 %v2328
        %2475 = vmatpush1.bf16.msra.mxu0 %v2327
        %2476 = vmatprep.subr.bf16.mxu0 %v2332
        %2477 = vmatpush1.bf16.msra.mxu0 %v2331
        %2478 = vmatprep.subr.bf16.mxu0 %v2336
        %2479 = vmatpush1.bf16.msra.mxu0 %v2335
        %2480 = vmatprep.subr.bf16.mxu0 %v2340
        %2481 = vmatpush1.bf16.msra.mxu0 %v2339
        %2482 = vmatprep.subr.bf16.mxu0 %v2344
        %2483 = vmatpush1.bf16.msra.mxu0 %v2343
        %2484 = vmatprep.subr.bf16.mxu0 %v2348
        %2485 = vmatpush1.bf16.msra.mxu0 %v2347
        %2486 = vmatprep.mubr.bf16.mxu0 %v2006
        %2487 = vmatmul.mubr.bf16.gmra.mrb[0].mxu0 %v2005
        %v2488 = vpop.f32.mrb[0].mxu0
        %v2489 = vadd.f32 %v2084, %v2488
        %v2490 = vpop.f32.mrb[0].mxu0
        %v2491 = vadd.f32 %v2088, %v2490
        %v2492 = vpop.f32.mrb[0].mxu0
        %v2493 = vpop.f32.mrb[0].mxu0
        %2494 = vdwg.mxu0
        %v2495 = vmul.f32 %v2448, 0.5
        %v2496 = vmul.f32 %v2450, 0.5
        %v2497 = vmul.f32 %v2489, 0.5
        %v2498 = vmul.f32 %v2491, 0.5
        %v2499 = vmul.f32 %v2448, 0.044715
        %v2500 = vmul.f32 %v2450, 0.044715
        %v2501 = vmul.f32 %v2489, 0.044715
        %v2502 = vmul.f32 %v2491, 0.044715
        %v2503 = vmul.f32 %v2499, %v2448
        %v2504 = vmul.f32 %v2500, %v2450
        %v2505 = vmul.f32 %v2501, %v2489
        %v2506 = vmul.f32 %v2502, %v2491
        %v2507 = vmul.f32 %v2503, %v2448
        %v2508 = vmul.f32 %v2504, %v2450
        %v2509 = vmul.f32 %v2505, %v2489
        %v2510 = vmul.f32 %v2506, %v2491
        %v2511 = vadd.f32 %v2448, %v2507
        %v2512 = vadd.f32 %v2450, %v2508
        %v2513 = vadd.f32 %v2489, %v2509
        %v2514 = vadd.f32 %v2491, %v2510
        %v2515 = vmul.f32 %v2511, 0.7978846
        %v2516 = vmul.f32 %v2512, 0.7978846
        %v2517 = vmul.f32 %v2513, 0.7978846
        %v2518 = vmul.f32 %v2514, 0.7978846
        %v2519 = vtanh.pop %v2515
        %v2520 = vtanh.pop %v2516
        %v2521 = vtanh.pop %v2517
        %v2522 = vtanh.pop %v2518
        %v2523 = vadd.f32 %v2519, 1.0
        %v2524 = vadd.f32 %v2520, 1.0
        %v2525 = vadd.f32 %v2521, 1.0
        %v2526 = vadd.f32 %v2522, 1.0
        %v2527 = vmul.f32 %v2495, %v2523
        %v2528 = vmul.f32 %v2496, %v2524
        %v2529 = vmul.f32 %v2497, %v2525
        %v2530 = vmul.f32 %v2498, %v2526
        %v2531 = vpack.c.bf16 %v2527, %v2527
        %v2532 = vpack.c.bf16 %v2528, %v2528
        %v2533 = vpack.c.bf16 %v2529, %v2529
        %v2534 = vpack.c.bf16 %v2530, %v2530
        %v2535 = vld [vmem:[#allocation11] sm:$0xff]
        %v2536 = vld [vmem:[#allocation11 + $0x8] sm:$0xff]
        %v2537 = vld [vmem:[#allocation11 + $0x10] sm:$0xff]
        %v2538 = vld [vmem:[#allocation11 + $0x18] sm:$0xff]
        %v2539 = vld [vmem:[#allocation11 + $0x20] sm:$0xff]
        %v2540 = vld [vmem:[#allocation11 + $0x28] sm:$0xff]
        %v2541 = vld [vmem:[#allocation11 + $0x30] sm:$0xff]
        %v2542 = vld [vmem:[#allocation11 + $0x38] sm:$0xff]
        %v2543 = vld [vmem:[#allocation11 + $0x40] sm:$0xff]
        %v2544 = vld [vmem:[#allocation11 + $0x48] sm:$0xff]
        %v2545 = vld [vmem:[#allocation11 + $0x50] sm:$0xff]
        %v2546 = vld [vmem:[#allocation11 + $0x58] sm:$0xff]
        %v2547 = vld [vmem:[#allocation11 + $0x60] sm:$0xff]
        %v2548 = vld [vmem:[#allocation11 + $0x68] sm:$0xff]
        %v2549 = vld [vmem:[#allocation11 + $0x70] sm:$0xff]
        %v2550 = vld [vmem:[#allocation11 + $0x78] sm:$0xff]
        %v2551 = vld [vmem:[#allocation11 + $0x80] sm:$0xff]
        %v2552 = vld [vmem:[#allocation11 + $0x88] sm:$0xff]
        %v2553 = vld [vmem:[#allocation11 + $0x90] sm:$0xff]
        %v2554 = vld [vmem:[#allocation11 + $0x98] sm:$0xff]
        %v2555 = vld [vmem:[#allocation11 + $0xa0] sm:$0xff]
        %v2556 = vld [vmem:[#allocation11 + $0xa8] sm:$0xff]
        %v2557 = vld [vmem:[#allocation11 + $0xb0] sm:$0xff]
        %v2558 = vld [vmem:[#allocation11 + $0xb8] sm:$0xff]
        %v2559 = vld [vmem:[#allocation11 + $0xc0] sm:$0xff]
        %v2560 = vld [vmem:[#allocation11 + $0xc8] sm:$0xff]
        %v2561 = vld [vmem:[#allocation11 + $0xd0] sm:$0xff]
        %v2562 = vld [vmem:[#allocation11 + $0xd8] sm:$0xff]
        %v2563 = vld [vmem:[#allocation11 + $0xe0] sm:$0xff]
        %v2564 = vld [vmem:[#allocation11 + $0xe8] sm:$0xff]
        %v2565 = vld [vmem:[#allocation11 + $0xf0] sm:$0xff]
        %v2566 = vld [vmem:[#allocation11 + $0xf8] sm:$0xff]
        %v2567 = vld [vmem:[#allocation11 + $0x100] sm:$0xff]
        %v2568 = vld [vmem:[#allocation11 + $0x108] sm:$0xff]
        %v2569 = vld [vmem:[#allocation11 + $0x110] sm:$0xff]
        %v2570 = vld [vmem:[#allocation11 + $0x118] sm:$0xff]
        %v2571 = vld [vmem:[#allocation11 + $0x120] sm:$0xff]
        %v2572 = vld [vmem:[#allocation11 + $0x128] sm:$0xff]
        %v2573 = vld [vmem:[#allocation11 + $0x130] sm:$0xff]
        %v2574 = vld [vmem:[#allocation11 + $0x138] sm:$0xff]
        %v2575 = vld [vmem:[#allocation11 + $0x140] sm:$0xff]
        %v2576 = vld [vmem:[#allocation11 + $0x148] sm:$0xff]
        %v2577 = vld [vmem:[#allocation11 + $0x150] sm:$0xff]
        %v2578 = vld [vmem:[#allocation11 + $0x158] sm:$0xff]
        %v2579 = vld [vmem:[#allocation11 + $0x160] sm:$0xff]
        %v2580 = vld [vmem:[#allocation11 + $0x168] sm:$0xff]
        %v2581 = vld [vmem:[#allocation11 + $0x170] sm:$0xff]
        %v2582 = vld [vmem:[#allocation11 + $0x178] sm:$0xff]
        %v2583 = vld [vmem:[#allocation11 + $0x180] sm:$0xff]
        %v2584 = vld [vmem:[#allocation11 + $0x188] sm:$0xff]
        %v2585 = vld [vmem:[#allocation11 + $0x190] sm:$0xff]
        %v2586 = vld [vmem:[#allocation11 + $0x198] sm:$0xff]
        %v2587 = vld [vmem:[#allocation11 + $0x1a0] sm:$0xff]
        %v2588 = vld [vmem:[#allocation11 + $0x1a8] sm:$0xff]
        %v2589 = vld [vmem:[#allocation11 + $0x1b0] sm:$0xff]
        %v2590 = vld [vmem:[#allocation11 + $0x1b8] sm:$0xff]
        %v2591 = vld [vmem:[#allocation11 + $0x1c0] sm:$0xff]
        %v2592 = vld [vmem:[#allocation11 + $0x1c8] sm:$0xff]
        %v2593 = vld [vmem:[#allocation11 + $0x1d0] sm:$0xff]
        %v2594 = vld [vmem:[#allocation11 + $0x1d8] sm:$0xff]
        %v2595 = vld [vmem:[#allocation11 + $0x1e0] sm:$0xff]
        %v2596 = vld [vmem:[#allocation11 + $0x1e8] sm:$0xff]
        %v2597 = vld [vmem:[#allocation11 + $0x1f0] sm:$0xff]
        %v2598 = vld [vmem:[#allocation11 + $0x1f8] sm:$0xff]
        %v2599 = vld [vmem:[%s9] sm:$0x3]
        %v2601 = vlaneseq
        %v2602 = vshrl.u32 %v2601, 7
        %v2603 = vsub.s32 0, %v2602
        %v2604 = vrot.slane %v2599, %v2603
        %v2605 = vlaneseq
        %v2606 = vshrl.u32 %v2605, 7
        %v2607 = vsub.s32 1, %v2606
        %v2608 = vrot.slane %v2599, %v2607
        %v2675 = vunpack.c.l.b16 %v2535
        %v2676 = vunpack.c.h.b16 %v2535
        %v2677 = vunpack.c.l.b16 %v2536
        %v2678 = vunpack.c.h.b16 %v2536
        %v2679 = vunpack.c.l.b16 %v2537
        %v2680 = vunpack.c.h.b16 %v2537
        %v2681 = vunpack.c.l.b16 %v2538
        %v2682 = vunpack.c.h.b16 %v2538
        %v2683 = vunpack.c.l.b16 %v2539
        %v2684 = vunpack.c.h.b16 %v2539
        %v2685 = vunpack.c.l.b16 %v2540
        %v2686 = vunpack.c.h.b16 %v2540
        %v2687 = vunpack.c.l.b16 %v2541
        %v2688 = vunpack.c.h.b16 %v2541
        %v2689 = vunpack.c.l.b16 %v2542
        %v2690 = vunpack.c.h.b16 %v2542
        %v2691 = vunpack.c.l.b16 %v2543
        %v2692 = vunpack.c.h.b16 %v2543
        %v2693 = vunpack.c.l.b16 %v2544
        %v2694 = vunpack.c.h.b16 %v2544
        %v2695 = vunpack.c.l.b16 %v2545
        %v2696 = vunpack.c.h.b16 %v2545
        %v2697 = vunpack.c.l.b16 %v2546
        %v2698 = vunpack.c.h.b16 %v2546
        %v2699 = vunpack.c.l.b16 %v2547
        %v2700 = vunpack.c.h.b16 %v2547
        %v2701 = vunpack.c.l.b16 %v2548
        %v2702 = vunpack.c.h.b16 %v2548
        %v2703 = vunpack.c.l.b16 %v2549
        %v2704 = vunpack.c.h.b16 %v2549
        %v2705 = vunpack.c.l.b16 %v2550
        %v2706 = vunpack.c.h.b16 %v2550
        %v2707 = vunpack.c.l.b16 %v2551
        %v2708 = vunpack.c.h.b16 %v2551
        %v2709 = vunpack.c.l.b16 %v2552
        %v2710 = vunpack.c.h.b16 %v2552
        %v2711 = vunpack.c.l.b16 %v2553
        %v2712 = vunpack.c.h.b16 %v2553
        %v2713 = vunpack.c.l.b16 %v2554
        %v2714 = vunpack.c.h.b16 %v2554
        %v2715 = vunpack.c.l.b16 %v2555
        %v2716 = vunpack.c.h.b16 %v2555
        %v2717 = vunpack.c.l.b16 %v2556
        %v2718 = vunpack.c.h.b16 %v2556
        %v2719 = vunpack.c.l.b16 %v2557
        %v2720 = vunpack.c.h.b16 %v2557
        %v2721 = vunpack.c.l.b16 %v2558
        %v2722 = vunpack.c.h.b16 %v2558
        %v2723 = vunpack.c.l.b16 %v2559
        %v2724 = vunpack.c.h.b16 %v2559
        %v2725 = vunpack.c.l.b16 %v2560
        %v2726 = vunpack.c.h.b16 %v2560
        %v2727 = vunpack.c.l.b16 %v2561
        %v2728 = vunpack.c.h.b16 %v2561
        %v2729 = vunpack.c.l.b16 %v2562
        %v2730 = vunpack.c.h.b16 %v2562
        %v2731 = vunpack.c.l.b16 %v2563
        %v2732 = vunpack.c.h.b16 %v2563
        %v2733 = vunpack.c.l.b16 %v2564
        %v2734 = vunpack.c.h.b16 %v2564
        %v2735 = vunpack.c.l.b16 %v2565
        %v2736 = vunpack.c.h.b16 %v2565
        %v2737 = vunpack.c.l.b16 %v2566
        %v2738 = vunpack.c.h.b16 %v2566
        %v2739 = vunpack.c.l.b16 %v2567
        %v2740 = vunpack.c.h.b16 %v2567
        %v2741 = vunpack.c.l.b16 %v2568
        %v2742 = vunpack.c.h.b16 %v2568
        %v2743 = vunpack.c.l.b16 %v2569
        %v2744 = vunpack.c.h.b16 %v2569
        %v2745 = vunpack.c.l.b16 %v2570
        %v2746 = vunpack.c.h.b16 %v2570
        %v2747 = vunpack.c.l.b16 %v2571
        %v2748 = vunpack.c.h.b16 %v2571
        %v2749 = vunpack.c.l.b16 %v2572
        %v2750 = vunpack.c.h.b16 %v2572
        %v2751 = vunpack.c.l.b16 %v2573
        %v2752 = vunpack.c.h.b16 %v2573
        %v2753 = vunpack.c.l.b16 %v2574
        %v2754 = vunpack.c.h.b16 %v2574
        %v2755 = vunpack.c.l.b16 %v2575
        %v2756 = vunpack.c.h.b16 %v2575
        %v2757 = vunpack.c.l.b16 %v2576
        %v2758 = vunpack.c.h.b16 %v2576
        %v2759 = vunpack.c.l.b16 %v2577
        %v2760 = vunpack.c.h.b16 %v2577
        %v2761 = vunpack.c.l.b16 %v2578
        %v2762 = vunpack.c.h.b16 %v2578
        %v2763 = vunpack.c.l.b16 %v2579
        %v2764 = vunpack.c.h.b16 %v2579
        %v2765 = vunpack.c.l.b16 %v2580
        %v2766 = vunpack.c.h.b16 %v2580
        %v2767 = vunpack.c.l.b16 %v2581
        %v2768 = vunpack.c.h.b16 %v2581
        %v2769 = vunpack.c.l.b16 %v2582
        %v2770 = vunpack.c.h.b16 %v2582
        %v2771 = vunpack.c.l.b16 %v2583
        %v2772 = vunpack.c.h.b16 %v2583
        %v2773 = vunpack.c.l.b16 %v2584
        %v2774 = vunpack.c.h.b16 %v2584
        %v2775 = vunpack.c.l.b16 %v2585
        %v2776 = vunpack.c.h.b16 %v2585
        %v2777 = vunpack.c.l.b16 %v2586
        %v2778 = vunpack.c.h.b16 %v2586
        %v2779 = vunpack.c.l.b16 %v2587
        %v2780 = vunpack.c.h.b16 %v2587
        %v2781 = vunpack.c.l.b16 %v2588
        %v2782 = vunpack.c.h.b16 %v2588
        %v2783 = vunpack.c.l.b16 %v2589
        %v2784 = vunpack.c.h.b16 %v2589
        %v2785 = vunpack.c.l.b16 %v2590
        %v2786 = vunpack.c.h.b16 %v2590
        %v2787 = vunpack.c.l.b16 %v2591
        %v2788 = vunpack.c.h.b16 %v2591
        %v2789 = vunpack.c.l.b16 %v2592
        %v2790 = vunpack.c.h.b16 %v2592
        %v2791 = vunpack.c.l.b16 %v2593
        %v2792 = vunpack.c.h.b16 %v2593
        %v2793 = vunpack.c.l.b16 %v2594
        %v2794 = vunpack.c.h.b16 %v2594
        %v2795 = vunpack.c.l.b16 %v2595
        %v2796 = vunpack.c.h.b16 %v2595
        %v2797 = vunpack.c.l.b16 %v2596
        %v2798 = vunpack.c.h.b16 %v2596
        %v2799 = vunpack.c.l.b16 %v2597
        %v2800 = vunpack.c.h.b16 %v2597
        %v2801 = vunpack.c.l.b16 %v2598
        %v2802 = vunpack.c.h.b16 %v2598
        %v2803 = vpack.c.b16 %v2677, %v2675
        %v2804 = vpack.c.b16 %v2678, %v2676
        %v2805 = vpack.c.b16 %v2681, %v2679
        %v2806 = vpack.c.b16 %v2682, %v2680
        %v2807 = vpack.c.b16 %v2685, %v2683
        %v2808 = vpack.c.b16 %v2686, %v2684
        %v2809 = vpack.c.b16 %v2689, %v2687
        %v2810 = vpack.c.b16 %v2690, %v2688
        %v2811 = vpack.c.b16 %v2693, %v2691
        %v2812 = vpack.c.b16 %v2694, %v2692
        %v2813 = vpack.c.b16 %v2697, %v2695
        %v2814 = vpack.c.b16 %v2698, %v2696
        %v2815 = vpack.c.b16 %v2701, %v2699
        %v2816 = vpack.c.b16 %v2702, %v2700
        %v2817 = vpack.c.b16 %v2705, %v2703
        %v2818 = vpack.c.b16 %v2706, %v2704
        %v2819 = vpack.c.b16 %v2709, %v2707
        %v2820 = vpack.c.b16 %v2710, %v2708
        %v2821 = vpack.c.b16 %v2713, %v2711
        %v2822 = vpack.c.b16 %v2714, %v2712
        %v2823 = vpack.c.b16 %v2717, %v2715
        %v2824 = vpack.c.b16 %v2718, %v2716
        %v2825 = vpack.c.b16 %v2721, %v2719
        %v2826 = vpack.c.b16 %v2722, %v2720
        %v2827 = vpack.c.b16 %v2725, %v2723
        %v2828 = vpack.c.b16 %v2726, %v2724
        %v2829 = vpack.c.b16 %v2729, %v2727
        %v2830 = vpack.c.b16 %v2730, %v2728
        %v2831 = vpack.c.b16 %v2733, %v2731
        %v2832 = vpack.c.b16 %v2734, %v2732
        %v2833 = vpack.c.b16 %v2737, %v2735
        %v2834 = vpack.c.b16 %v2738, %v2736
        %v2835 = vpack.c.b16 %v2741, %v2739
        %v2836 = vpack.c.b16 %v2742, %v2740
        %v2837 = vpack.c.b16 %v2745, %v2743
        %v2838 = vpack.c.b16 %v2746, %v2744
        %v2839 = vpack.c.b16 %v2749, %v2747
        %v2840 = vpack.c.b16 %v2750, %v2748
        %v2841 = vpack.c.b16 %v2753, %v2751
        %v2842 = vpack.c.b16 %v2754, %v2752
        %v2843 = vpack.c.b16 %v2757, %v2755
        %v2844 = vpack.c.b16 %v2758, %v2756
        %v2845 = vpack.c.b16 %v2761, %v2759
        %v2846 = vpack.c.b16 %v2762, %v2760
        %v2847 = vpack.c.b16 %v2765, %v2763
        %v2848 = vpack.c.b16 %v2766, %v2764
        %v2849 = vpack.c.b16 %v2769, %v2767
        %v2850 = vpack.c.b16 %v2770, %v2768
        %v2851 = vpack.c.b16 %v2773, %v2771
        %v2852 = vpack.c.b16 %v2774, %v2772
        %v2853 = vpack.c.b16 %v2777, %v2775
        %v2854 = vpack.c.b16 %v2778, %v2776
        %v2855 = vpack.c.b16 %v2781, %v2779
        %v2856 = vpack.c.b16 %v2782, %v2780
        %v2857 = vpack.c.b16 %v2785, %v2783
        %v2858 = vpack.c.b16 %v2786, %v2784
        %v2859 = vpack.c.b16 %v2789, %v2787
        %v2860 = vpack.c.b16 %v2790, %v2788
        %v2861 = vpack.c.b16 %v2793, %v2791
        %v2862 = vpack.c.b16 %v2794, %v2792
        %v2863 = vpack.c.b16 %v2797, %v2795
        %v2864 = vpack.c.b16 %v2798, %v2796
        %v2865 = vpack.c.b16 %v2801, %v2799
        %v2866 = vpack.c.b16 %v2802, %v2800
        %2931 = vmatprep.subr.bf16.mxu0 %v2804
        %2932 = vmatpush1.bf16.msra.mxu0 %v2803
        %2933 = vmatprep.subr.bf16.mxu0 %v2806
        %2934 = vmatpush1.bf16.msra.mxu0 %v2805
        %2935 = vmatprep.subr.bf16.mxu0 %v2808
        %2936 = vmatpush1.bf16.msra.mxu0 %v2807
        %2937 = vmatprep.subr.bf16.mxu0 %v2810
        %2938 = vmatpush1.bf16.msra.mxu0 %v2809
        %2939 = vmatprep.subr.bf16.mxu0 %v2812
        %2940 = vmatpush1.bf16.msra.mxu0 %v2811
        %2941 = vmatprep.subr.bf16.mxu0 %v2814
        %2942 = vmatpush1.bf16.msra.mxu0 %v2813
        %2943 = vmatprep.subr.bf16.mxu0 %v2816
        %2944 = vmatpush1.bf16.msra.mxu0 %v2815
        %2945 = vmatprep.subr.bf16.mxu0 %v2818
        %2946 = vmatpush1.bf16.msra.mxu0 %v2817
        %2947 = vmatprep.subr.bf16.mxu0 %v2820
        %2948 = vmatpush1.bf16.msra.mxu0 %v2819
        %2949 = vmatprep.subr.bf16.mxu0 %v2822
        %2950 = vmatpush1.bf16.msra.mxu0 %v2821
        %2951 = vmatprep.subr.bf16.mxu0 %v2824
        %2952 = vmatpush1.bf16.msra.mxu0 %v2823
        %2953 = vmatprep.subr.bf16.mxu0 %v2826
        %2954 = vmatpush1.bf16.msra.mxu0 %v2825
        %2955 = vmatprep.subr.bf16.mxu0 %v2828
        %2956 = vmatpush1.bf16.msra.mxu0 %v2827
        %2957 = vmatprep.subr.bf16.mxu0 %v2830
        %2958 = vmatpush1.bf16.msra.mxu0 %v2829
        %2959 = vmatprep.subr.bf16.mxu0 %v2832
        %2960 = vmatpush1.bf16.msra.mxu0 %v2831
        %2961 = vmatprep.subr.bf16.mxu0 %v2834
        %2962 = vmatpush1.bf16.msra.mxu0 %v2833
        %2963 = vmatprep.mubr.bf16.mxu0 %v2532
        %2964 = vmatmul.mubr.bf16.gmra.mrb[0].mxu0 %v2531
        %v2965 = vpop.f32.mrb[0].mxu0
        %v2966 = vadd.f32 %v2604, %v2965
        %v2967 = vpop.f32.mrb[0].mxu0
        %v2968 = vadd.f32 %v2608, %v2967
        %v2969 = vpop.f32.mrb[0].mxu0
        %v2970 = vpop.f32.mrb[0].mxu0
        %2971 = vdwg.mxu0
        %2972 = vmatprep.subr.bf16.mxu0 %v2836
        %2973 = vmatpush1.bf16.msra.mxu0 %v2835
        %2974 = vmatprep.subr.bf16.mxu0 %v2838
        %2975 = vmatpush1.bf16.msra.mxu0 %v2837
        %2976 = vmatprep.subr.bf16.mxu0 %v2840
        %2977 = vmatpush1.bf16.msra.mxu0 %v2839
        %2978 = vmatprep.subr.bf16.mxu0 %v2842
        %2979 = vmatpush1.bf16.msra.mxu0 %v2841
        %2980 = vmatprep.subr.bf16.mxu0 %v2844
        %2981 = vmatpush1.bf16.msra.mxu0 %v2843
        %2982 = vmatprep.subr.bf16.mxu0 %v2846
        %2983 = vmatpush1.bf16.msra.mxu0 %v2845
        %2984 = vmatprep.subr.bf16.mxu0 %v2848
        %2985 = vmatpush1.bf16.msra.mxu0 %v2847
        %2986 = vmatprep.subr.bf16.mxu0 %v2850
        %2987 = vmatpush1.bf16.msra.mxu0 %v2849
        %2988 = vmatprep.subr.bf16.mxu0 %v2852
        %2989 = vmatpush1.bf16.msra.mxu0 %v2851
        %2990 = vmatprep.subr.bf16.mxu0 %v2854
        %2991 = vmatpush1.bf16.msra.mxu0 %v2853
        %2992 = vmatprep.subr.bf16.mxu0 %v2856
        %2993 = vmatpush1.bf16.msra.mxu0 %v2855
        %2994 = vmatprep.subr.bf16.mxu0 %v2858
        %2995 = vmatpush1.bf16.msra.mxu0 %v2857
        %2996 = vmatprep.subr.bf16.mxu0 %v2860
        %2997 = vmatpush1.bf16.msra.mxu0 %v2859
        %2998 = vmatprep.subr.bf16.mxu0 %v2862
        %2999 = vmatpush1.bf16.msra.mxu0 %v2861
        %3000 = vmatprep.subr.bf16.mxu0 %v2864
        %3001 = vmatpush1.bf16.msra.mxu0 %v2863
        %3002 = vmatprep.subr.bf16.mxu0 %v2866
        %3003 = vmatpush1.bf16.msra.mxu0 %v2865
        %3004 = vmatprep.mubr.bf16.mxu0 %v2534
        %3005 = vmatmul.mubr.bf16.gmra.mrb[0].mxu0 %v2533
        %v3006 = vpop.f32.mrb[0].mxu0
        %v3007 = vadd.f32 %v2966, %v3006
        %v3008 = vpop.f32.mrb[0].mxu0
        %v3009 = vadd.f32 %v2968, %v3008
        %v3010 = vpop.f32.mrb[0].mxu0
        %v3011 = vpop.f32.mrb[0].mxu0
        %3012 = vdwg.mxu0
        %v3013 = vadd.f32 %v1817, %v3007
        %v3014 = vadd.f32 %v1818, %v3009
        %3015 = vst [vmem:[%s556] sm:$0xff] %v3013
        %3016 = vst [vmem:[%s556 + $0x8] sm:$0xff] %v3014
        %s3017 = sand.u32 %s341, 1
        %s3018 = scalar_lea.sflag [#allocation4], %s3017
        %s3019 = sand.u32 %s341, 1
        %s3020 = smul.addr %s3019, 16
        %s3021 = scalar_lea.vmem [#allocation13], %s3020
        // Predicated region
        $region101: #{tpu_custom_call.1} parent=75 // pred_check
          %p3022 = pneg %p351
        $region102: #{tpu_custom_call.1} parent=75 // pred_check_branch
          %3024 = sbr.rel (%p3022) target = $region104
        $region103: #{tpu_custom_call.1} parent=75 // pred_region
          %s3026 = ssub.s32 256, 256
          %3027 = vsyncadd %s3018, %s3026
          %s3028 = smul.addr %s34, 2
          %s3029 = smul.addr %s3028, 128
          %s3030 = scalar_lea.hbm %s14, %s3029
          %s3032 = sshll.u32 %s3021, 4
          %s3033 = int_to_ptr.vmem [resolvable:$true] %s3032
          %3035 = dma.vmem_to_hbm [thread:$0]  %s3033, 256, %s3030, %s3018
        $region104: #{tpu_custom_call.1} parent=75 // pred_fallthru
          _
      $region76: #{tpu_custom_call.1} parent=5 // pred_fallthru
        _
      %p3036 = scmp.le.s32.totalorder 2, %s29
      // Predicated region
      $region105: #{tpu_custom_call.1} parent=5 // pred_check
        %p3037 = pneg %p3036
      $region106: #{tpu_custom_call.1} parent=5 // pred_check_branch
        %3039 = sbr.rel (%p3037) target = $region108
      $region107: #{tpu_custom_call.1} parent=5 // pred_region
        %s3040 = ssub.s32 %s29, 2
        // Predicated region
        $region109: #{tpu_custom_call.1} parent=107 // pred_check
          %p3041 = pneg %p357
        $region110: #{tpu_custom_call.1} parent=107 // pred_check_branch
          %3043 = sbr.rel (%p3041) target = $region112
        $region111: #{tpu_custom_call.1} parent=107 // pred_region
          %s3044 = sand.u32 %s342, 1
          %s3045 = scalar_lea.sflag [#allocation4], %s3044
          %s3046 = sand.u32 %s342, 1
          %s3047 = smul.addr %s3046, 16
          %s3048 = scalar_lea.vmem [#allocation13], %s3047
          %3049 = dma.done %s3045, 256
        $region112: #{tpu_custom_call.1} parent=107 // pred_fallthru
          _
      $region108: #{tpu_custom_call.1} parent=5 // pred_fallthru
        _
    $region6: #{tpu_custom_call.1} parent=1 // loop_footer
      %s33 = sadd.s32 1, %s29
    $region7: #{tpu_custom_call.1} parent=1 // loop_footer_branch
      %28 = sbr.rel target = $region3
    $region8: #{tpu_custom_call.1} parent=1 // loop_exit
      _
    %3050 = vsyncpa [#allocation3], 1
    %s3051 = scalar_lea.sflag [#allocation3], 1
    %3052 = vsyncpa %s3051, 1
    %3053 = vsyncpa [#allocation6], 1
    %3054 = vsyncpa [#allocation9], 1
    %3055 = vsyncpa [#allocation12], 1
    %3056 = vsyncpa [#allocation4], 1
    %s3057 = scalar_lea.sflag [#allocation4], 1
    %3058 = vsyncpa %s3057, 1

</llo_original>
